<compile_context>
chip_gen: v5e
topology: v5e:2x2
jax: 0.10.0
libtpu: 0.0.40
codegen_flags: <defaults>
</compile_context>

<pallas_src>
import functools

import jax
import jax.numpy as jnp
from jax import lax
from jax.experimental import pallas as pl
from jax.experimental.pallas import tpu as pltpu


# ---------------------------------------------------------------------------
# Pallas kernel: MIML sub_concept_layer
#   grid = (num_batch_tiles, K)   — batch tiles parallel, K is a reduction axis
#   x      : (TB*HWP, C)   bf16   one tile per batch step (constant across k)
#   w_eff  : (C, K*L)      bf16   VMEM-resident (constant index_map)
#   b_eff  : (1, K*L)      f32    VMEM-resident (constant index_map)
#   out    : (TB, L)       f32
# ---------------------------------------------------------------------------
def _miml_kernel(x_ref, w_ref, b_ref, o_ref, acc_ref, *, TB, HW, HWP, K, L):
    k = pl.program_id(1)
    M = TB * HWP

    # New batch tile -> reset the running max over the K sub-concepts.
    @pl.when(k == 0)
    def _():
        acc_ref[...] = jnp.full((M, L), -jnp.inf, jnp.float32)

    # Slice the k-th (C, L) slab out of the resident fused weight / bias.
    start = k * L
    if L % 128 == 0:
        start = pl.multiple_of(start, 128)
    w_k = w_ref[:, pl.ds(start, L)]                                  # (C, L) bf16
    b_k = b_ref[:, pl.ds(start, L)]                                  # (1, L) f32

    # Fused conv1∘dropout1(identity)∘conv2 for sub-concept slice k:
    # bf16 x bf16 MXU matmul with f32 accumulation, bias add in f32.
    s = jnp.dot(x_ref[...], w_k, preferred_element_type=jnp.float32) + b_k
    acc_ref[...] = jnp.maximum(acc_ref[...], s)                      # maxpool1 (over K)

    # Epilogue only on the last k step: per-image softmax over L, max over HW.
    @pl.when(k == K - 1)
    def _():
        if HW < HWP:
            # Hoisted once (broadcast is not CSE'd): mask out padded HW rows.
            keep = lax.broadcasted_iota(jnp.int32, (HWP, L), 0) < HW
        for t in range(TB):                                          # per-image slab
            m = acc_ref[pl.ds(t * HWP, HWP), :]                      # (HWP, L) f32
            e = jnp.exp(m - jnp.max(m, axis=-1, keepdims=True))
            denom = jnp.sum(e, axis=-1, keepdims=True)
            p = e * pl.reciprocal(denom, approx=True)                # softmax over L
            if HW < HWP:
                p = jnp.where(keep, p, -jnp.inf)                     # drop padded rows
            # maxpool2: per-image max over the HW spatial positions.
            o_ref[pl.ds(t, 1), :] = jnp.max(p, axis=0, keepdims=True)


def _vmem_budget_bytes(M, C, K, L, TB):
    """Working-set based VMEM request with headroom, capped below v7x's 64 MiB."""
    x_tile = M * C * 2                       # bf16, double-buffered
    w = C * K * L * 2                        # bf16 resident (budget 2x to be safe)
    b = K * L * 4
    acc = M * L * 4
    out_tile = TB * L * 4
    epi = 4 * (M // TB) * L * 4              # per-image epilogue temporaries
    total = 2 * x_tile + 2 * w + 2 * b + acc + 2 * out_tile + epi + (4 << 20)
    return int(min(max(total, 16 << 20), 56 << 20))


def miml_sub_concept(feat_flat, w_eff, b_eff, *, L, K, TB=16):
    """feat_flat: (B, HW, C) -> (B, L) float32.

    w_eff: (C, K*L) bf16, columns in k-major order (j = k*L + l).
    b_eff: (1, K*L) f32, same column order.
    TB:    images per batch tile; TB*HW_pad should be >= 256 to fill the MXU M
           dimension on v6e/v7x (128 suffices on v5e).
    """
    B, HW, C = feat_flat.shape
    HWP = ((HW + 15) // 16) * 16             # pad HW to the bf16 sublane pack
    TB = max(8, ((TB + 7) // 8) * 8)         # output block sublane alignment
    nb = (B + TB - 1) // TB
    B_pad = nb * TB
    M = TB * HWP

    x = feat_flat.astype(jnp.bfloat16)
    if B_pad != B or HWP != HW:
        x = jnp.pad(x, ((0, B_pad - B), (0, HWP - HW), (0, 0)))
    x2d = x.reshape(B_pad * HWP, C)          # host-side collapse: zero-cost LHS view

    kernel = functools.partial(_miml_kernel, TB=TB, HW=HW, HWP=HWP, K=K, L=L)
    out = pl.pallas_call(
        kernel,
        out_shape=jax.ShapeDtypeStruct((B_pad, L), jnp.float32),
        grid_spec=pltpu.PrefetchScalarGridSpec(
            num_scalar_prefetch=0,
            grid=(nb, K),
            in_specs=[
                # activations: one (TB*HWP, C) tile per batch step, constant over k
                pl.BlockSpec((M, C), lambda b, k: (b, 0)),
                # fused weight: full array, constant index_map -> VMEM-resident
                pl.BlockSpec((C, K * L), lambda b, k: (0, 0)),
                # fused bias: full array, resident
                pl.BlockSpec((1, K * L), lambda b, k: (0, 0)),
            ],
            out_specs=pl.BlockSpec((TB, L), lambda b, k: (b, 0)),
            scratch_shapes=[pltpu.VMEM((M, L), jnp.float32)],
        ),
        compiler_params=pltpu.CompilerParams(
            # batch tiles parallel (>= 2 so both v7x TensorCores get work),
            # K is a reduction axis with a resident accumulator -> arbitrary.
            dimension_semantics=("parallel", "arbitrary"),
            vmem_limit_bytes=_vmem_budget_bytes(M, C, K, L, TB),
        ),
    )(x2d, w_eff, b_eff)
    return out[:B]


# ---------------------------------------------------------------------------
# Host-side weight preparation (glue)
# ---------------------------------------------------------------------------
def prepare_sub_concept_params(w1_oi, b1, w2_oi, b2, L, K):
    """Fold conv1 (1x1) + dropout1(identity at eval) + conv2 (1x1) into one
    affine map, permute the output channels from PyTorch's l-major order
    (c = l*K + k) to k-major (c = k*L + l), and cast the weight to bf16."""
    w_eff = w1_oi.T @ w2_oi.T                      # (C, K*L), f32, l-major cols
    b_eff = b1 @ w2_oi.T + b2                      # (K*L,),  f32, l-major
    j = jnp.arange(K * L)
    perm = (j % L) * K + (j // L)                  # new col j=(k*L+l) <- old l*K+k
    w_eff = w_eff[:, perm].astype(jnp.bfloat16)    # (C, K*L) k-major, bf16
    b_eff = b_eff[perm][None, :].astype(jnp.float32)
    return w_eff, b_eff


# ---------------------------------------------------------------------------
# Plain-JAX glue: VGG16-features[:-1] style backbone (deterministic init)
# ---------------------------------------------------------------------------
VGG_CFG = (16, 16, 'M', 32, 32, 'M', 64, 64, 64, 'M',
           128, 128, 128, 'M', 128, 128, 128)   # scaled-down vgg16.features[:-1]


def init_backbone(key, in_ch=3):
    params, c_in = [], in_ch
    for v in VGG_CFG:
        if v == 'M':
            continue
        key, wk = jax.random.split(key)
        std = (2.0 / (9 * c_in)) ** 0.5
        w = std * jax.random.normal(wk, (v, c_in, 3, 3), jnp.float32)
        b = jnp.zeros((v,), jnp.float32)
        params.append((w, b))
        c_in = v
    return params, c_in


def backbone_forward(params, x):
    # x: NCHW
    idx = 0
    for v in VGG_CFG:
        if v == 'M':
            x = lax.reduce_window(x, -jnp.inf, lax.max,
                                  (1, 1, 2, 2), (1, 1, 2, 2), 'VALID')
        else:
            w, b = params[idx]
            idx += 1
            x = lax.conv_general_dilated(
                x, w, (1, 1), 'SAME',
                dimension_numbers=('NCHW', 'OIHW', 'NCHW'))
            x = jax.nn.relu(x + b[None, :, None, None])
    return x


# ---------------------------------------------------------------------------
# References (for checking)
# ---------------------------------------------------------------------------
def miml_reference_f32(feat_nchw, w1_oi, b1, w2_oi, b2, L, K):
    """Exact f32 mirror of the PyTorch sub_concept_layer forward (eval mode)."""
    B, C, H, W = feat_nchw.shape
    HW = H * W
    f = feat_nchw.reshape(B, C, HW)
    h = jnp.einsum('oc,bcp->bop', w1_oi, f) + b1[None, :, None]       # conv1
    s = jnp.einsum('oc,bcp->bop', w2_oi, h) + b2[None, :, None]       # conv2
    s = s.reshape(B, L, K, HW)                                        # l-major
    m = jnp.max(s, axis=2)                                            # maxpool1
    p = jax.nn.softmax(m, axis=1)                                     # softmax over L
    return jnp.max(p, axis=2)                                         # maxpool2


def miml_reference_matched(feat_flat_bf16, w_eff_bf16, b_eff, L, K):
    """Same math as the kernel (same bf16-quantized operands, f32 accumulate)
    in plain JAX — validates the Pallas tiling/indexing tightly."""
    B, HW, C = feat_flat_bf16.shape
    s = jnp.einsum('bpc,cj->bpj',
                   feat_flat_bf16.astype(jnp.float32),
                   w_eff_bf16.astype(jnp.float32)) + b_eff            # (B,HW,K*L)
    s = s.reshape(B, HW, K, L)                                        # k-major cols
    m = jnp.max(s, axis=2)                                            # (B,HW,L)
    p = jax.nn.softmax(m, axis=-1)
    return jnp.max(p, axis=1)                                         # (B, L)


if __name__ == "__main__":
    L, K = 128, 4          # scaled-down stand-ins for the real L=1024, K=20
    B = 24                 # pads to 32 = 2 batch tiles of TB=16 (2 parallel steps)
    TB = 16                # M = TB*HW_pad = 256 rows/step -> fills 256-wide MXU

    key = jax.random.PRNGKey(0)
    k_img, k_bb, k_w1, k_b1, k_w2, k_b2 = jax.random.split(key, 6)

    # Input image, NCHW like the PyTorch module.  48x48 -> 3x3 feature map
    # (HW=9), exercising the HW -> 16 sublane padding path.
    x = jax.random.normal(k_img, (B, 3, 48, 48), jnp.float32)

    bb_params, C = init_backbone(k_bb)
    feat = backbone_forward(bb_params, x)                   # (B, 128, 3, 3)
    Bf, Cf, H, W = feat.shape
    HW = H * W

    # sub_concept_layer parameters (PyTorch 1x1-conv layout: (Cout, Cin))
    w1_oi = (0.5 / Cf ** 0.5) * jax.random.normal(k_w1, (Cf, Cf), jnp.float32)
    b1 = 0.01 * jax.random.normal(k_b1, (Cf,), jnp.float32)
    w2_oi = (0.5 / Cf ** 0.5) * jax.random.normal(k_w2, (K * L, Cf), jnp.float32)
    b2 = 0.01 * jax.random.normal(k_b2, (K * L,), jnp.float32)

    # Host-side prep: fuse conv1/conv2, permute to k-major, cast to bf16.
    w_eff, b_eff = prepare_sub_concept_params(w1_oi, b1, w2_oi, b2, L, K)

    # (B, C, H, W) -> (B, HW, C)
    feat_flat = feat.reshape(Bf, Cf, HW).transpose(0, 2, 1)

    out = miml_sub_concept(feat_flat, w_eff, b_eff, L=L, K=K, TB=TB)
    out = jax.block_until_ready(out)
    assert out.shape == (B, L), out.shape

    # Tight check vs. a quantization-matched reference (same bf16 operands).
    ref_m = miml_reference_matched(feat_flat.astype(jnp.bfloat16), w_eff, b_eff, L, K)
    err_m = float(jnp.max(jnp.abs(out - ref_m)))
    assert err_m < 5e-3, err_m

    # Semantic check vs. the exact-f32 PyTorch-faithful forward (bf16 drift only).
    ref_f = miml_reference_f32(feat, w1_oi, b1, w2_oi, b2, L, K)
    err_f = float(jnp.max(jnp.abs(out - ref_f)))
    assert err_f < 5e-2, err_f

    print("KERNEL_OK")
</pallas_src>

<mosaic_0001>
module attributes {stable_mosaic.version = 11 : i64} {
  func.func @_miml_kernel(%arg0: i32, %arg1: i32, %arg2: memref<256x128xbf16, #tpu.memory_space<vmem>>, %arg3: memref<128x512xbf16, #tpu.memory_space<vmem>>, %arg4: memref<1x512xf32, #tpu.memory_space<vmem>>, %arg5: memref<16x128xf32, #tpu.memory_space<vmem>>, %arg6: memref<256x128xf32, #tpu.memory_space<vmem>>) attributes {dimension_semantics = [#tpu.dimension_semantics<parallel>, #tpu.dimension_semantics<arbitrary>], iteration_bounds = array<i64: 2, 4>, scalar_prefetch = 0 : i64, scratch_operands = 1 : i64, tpu.core_type = #tpu.core_type<tc>, window_params = [{transform_indices = @transform_0, window_bounds = array<i64: 256, 128>}, {pipeline_mode = #tpu.pipeline_mode<synchronous>, transform_indices = @transform_1, window_bounds = array<i64: 128, 512>}, {pipeline_mode = #tpu.pipeline_mode<synchronous>, transform_indices = @transform_2, window_bounds = array<i64: 1, 512>}, {transform_indices = @transform_3, window_bounds = array<i64: 16, 128>}]} {
    %c0_i32 = arith.constant 0 : i32
    %0 = arith.cmpi eq, %arg1, %c0_i32 : i32
    %1 = arith.extui %0 : i1 to i32
    %c0_i32_0 = arith.constant 0 : i32
    %2 = arith.cmpi ne, %1, %c0_i32_0 : i32
    scf.if %2 {
      %cst_9 = arith.constant 0xFF800000 : f32
      %19 = vector.broadcast %cst_9 : f32 to vector<256x128xf32>
      %c0_10 = arith.constant 0 : index
      %c0_11 = arith.constant 0 : index
      %20 = vector.load %arg6[%c0_10, %c0_11] : memref<256x128xf32, #tpu.memory_space<vmem>>, vector<256x128xf32>
      tpu.vector_store %arg6[%c0_10, %c0_11], %19 {strides = array<i32>} : memref<256x128xf32, #tpu.memory_space<vmem>>, vector<256x128xf32>,
    } else {
    }
    %c128_i32 = arith.constant 128 : i32
    %3 = arith.muli %arg1, %c128_i32 : i32
    %4 = tpu.assume_multiple %3, 128 : i32
    %c0 = arith.constant 0 : index
    %5 = arith.index_cast %4 : i32 to index
    %6 = vector.load %arg3[%c0, %5] : memref<128x512xbf16, #tpu.memory_space<vmem>>, vector<128x128xbf16>
    %c0_1 = arith.constant 0 : index
    %7 = arith.index_cast %4 : i32 to index
    %8 = vector.load %arg4[%c0_1, %7] : memref<1x512xf32, #tpu.memory_space<vmem>>, vector<1x128xf32>
    %c0_2 = arith.constant 0 : index
    %c0_3 = arith.constant 0 : index
    %9 = vector.load %arg2[%c0_2, %c0_3] : memref<256x128xbf16, #tpu.memory_space<vmem>>, vector<256x128xbf16>
    %cst = arith.constant dense<0.000000e+00> : vector<256x128xf32>
    %10 = tpu.matmul %9, %6, %cst {dimension_numbers = #tpu.dot_dimension_numbers<[1], [0], [0], [1], [0, 0, 1, 1], [], []>} : vector<256x128xbf16>, vector<128x128xbf16>, vector<256x128xf32> -> vector<256x128xf32>
    %11 = vector.broadcast %8 : vector<1x128xf32> to vector<256x128xf32>
    %12 = arith.addf %10, %11 : vector<256x128xf32>
    %c0_4 = arith.constant 0 : index
    %c0_5 = arith.constant 0 : index
    %13 = vector.load %arg6[%c0_4, %c0_5] : memref<256x128xf32, #tpu.memory_space<vmem>>, vector<256x128xf32>
    %14 = arith.maximumf %13, %12 : vector<256x128xf32>
    %c0_6 = arith.constant 0 : index
    %c0_7 = arith.constant 0 : index
    %15 = vector.load %arg6[%c0_6, %c0_7] : memref<256x128xf32, #tpu.memory_space<vmem>>, vector<256x128xf32>
    tpu.vector_store %arg6[%c0_6, %c0_7], %14 {strides = array<i32>} : memref<256x128xf32, #tpu.memory_space<vmem>>, vector<256x128xf32>,
    %c3_i32 = arith.constant 3 : i32
    %16 = arith.cmpi eq, %arg1, %c3_i32 : i32
    %17 = arith.extui %16 : i1 to i32
    %c0_i32_8 = arith.constant 0 : i32
    %18 = arith.cmpi ne, %17, %c0_i32_8 : i32
    scf.if %18 {
      %19 = tpu.iota {dimensions = array<i32: 0>} : vector<16x128xi32>
      %c9_i32 = arith.constant 9 : i32
      %20 = vector.broadcast %c9_i32 : i32 to vector<16x128xi32>
      %21 = arith.cmpi slt, %19, %20 : vector<16x128xi32>
      %c0_9 = arith.constant 0 : index
      %c0_10 = arith.constant 0 : index
      %22 = vector.load %arg6[%c0_9, %c0_10] : memref<256x128xf32, #tpu.memory_space<vmem>>, vector<16x128xf32>
      %cst_11 = arith.constant dense<0xFF800000> : vector<16xf32>
      %23 = vector.multi_reduction <maximumf>, %22, %cst_11 [1] : vector<16x128xf32> to vector<16xf32>
      %24 = vector.shape_cast %23 : vector<16xf32> to vector<16x1xf32>
      %25 = vector.broadcast %24 : vector<16x1xf32> to vector<16x128xf32>
      %26 = arith.subf %22, %25 : vector<16x128xf32>
      %27 = math.exp %26 : vector<16x128xf32>
      %cst_12 = arith.constant dense<0.000000e+00> : vector<16xf32>
      %28 = vector.multi_reduction <add>, %27, %cst_12 [1] : vector<16x128xf32> to vector<16xf32>
      %29 = vector.shape_cast %28 : vector<16xf32> to vector<16x1xf32>
      %30 = tpu.reciprocal %29 {approx = true} : vector<16x1xf32> -> vector<16x1xf32>
      %31 = vector.broadcast %30 : vector<16x1xf32> to vector<16x128xf32>
      %32 = arith.mulf %27, %31 : vector<16x128xf32>
      %cst_13 = arith.constant 0xFF800000 : f32
      %33 = vector.broadcast %cst_13 : f32 to vector<16x128xf32>
      %34 = arith.select %21, %32, %33 : vector<16x128xi1>, vector<16x128xf32>
      %cst_14 = arith.constant dense<0xFF800000> : vector<128xf32>
      %35 = vector.multi_reduction <maximumf>, %34, %cst_14 [0] : vector<16x128xf32> to vector<128xf32>
      %36 = vector.shape_cast %35 : vector<128xf32> to vector<1x128xf32>
      %c0_15 = arith.constant 0 : index
      %c0_16 = arith.constant 0 : index
      %37 = vector.load %arg5[%c0_15, %c0_16] : memref<16x128xf32, #tpu.memory_space<vmem>>, vector<1x128xf32>
      tpu.vector_store %arg5[%c0_15, %c0_16], %36 {strides = array<i32>} : memref<16x128xf32, #tpu.memory_space<vmem>>, vector<1x128xf32>,
      %c16 = arith.constant 16 : index
      %c0_17 = arith.constant 0 : index
      %38 = vector.load %arg6[%c16, %c0_17] : memref<256x128xf32, #tpu.memory_space<vmem>>, vector<16x128xf32>
      %cst_18 = arith.constant dense<0xFF800000> : vector<16xf32>
      %39 = vector.multi_reduction <maximumf>, %38, %cst_18 [1] : vector<16x128xf32> to vector<16xf32>
      %40 = vector.shape_cast %39 : vector<16xf32> to vector<16x1xf32>
      %41 = vector.broadcast %40 : vector<16x1xf32> to vector<16x128xf32>
      %42 = arith.subf %38, %41 : vector<16x128xf32>
      %43 = math.exp %42 : vector<16x128xf32>
      %cst_19 = arith.constant dense<0.000000e+00> : vector<16xf32>
      %44 = vector.multi_reduction <add>, %43, %cst_19 [1] : vector<16x128xf32> to vector<16xf32>
      %45 = vector.shape_cast %44 : vector<16xf32> to vector<16x1xf32>
      %46 = tpu.reciprocal %45 {approx = true} : vector<16x1xf32> -> vector<16x1xf32>
      %47 = vector.broadcast %46 : vector<16x1xf32> to vector<16x128xf32>
      %48 = arith.mulf %43, %47 : vector<16x128xf32>
      %cst_20 = arith.constant 0xFF800000 : f32
      %49 = vector.broadcast %cst_20 : f32 to vector<16x128xf32>
      %50 = arith.select %21, %48, %49 : vector<16x128xi1>, vector<16x128xf32>
      %cst_21 = arith.constant dense<0xFF800000> : vector<128xf32>
      %51 = vector.multi_reduction <maximumf>, %50, %cst_21 [0] : vector<16x128xf32> to vector<128xf32>
      %52 = vector.shape_cast %51 : vector<128xf32> to vector<1x128xf32>
      %c1 = arith.constant 1 : index
      %c0_22 = arith.constant 0 : index
      %53 = vector.load %arg5[%c1, %c0_22] : memref<16x128xf32, #tpu.memory_space<vmem>>, vector<1x128xf32>
      tpu.vector_store %arg5[%c1, %c0_22], %52 {strides = array<i32>} : memref<16x128xf32, #tpu.memory_space<vmem>>, vector<1x128xf32>,
      %c32 = arith.constant 32 : index
      %c0_23 = arith.constant 0 : index
      %54 = vector.load %arg6[%c32, %c0_23] : memref<256x128xf32, #tpu.memory_space<vmem>>, vector<16x128xf32>
      %cst_24 = arith.constant dense<0xFF800000> : vector<16xf32>
      %55 = vector.multi_reduction <maximumf>, %54, %cst_24 [1] : vector<16x128xf32> to vector<16xf32>
      %56 = vector.shape_cast %55 : vector<16xf32> to vector<16x1xf32>
      %57 = vector.broadcast %56 : vector<16x1xf32> to vector<16x128xf32>
      %58 = arith.subf %54, %57 : vector<16x128xf32>
      %59 = math.exp %58 : vector<16x128xf32>
      %cst_25 = arith.constant dense<0.000000e+00> : vector<16xf32>
      %60 = vector.multi_reduction <add>, %59, %cst_25 [1] : vector<16x128xf32> to vector<16xf32>
      %61 = vector.shape_cast %60 : vector<16xf32> to vector<16x1xf32>
      %62 = tpu.reciprocal %61 {approx = true} : vector<16x1xf32> -> vector<16x1xf32>
      %63 = vector.broadcast %62 : vector<16x1xf32> to vector<16x128xf32>
      %64 = arith.mulf %59, %63 : vector<16x128xf32>
      %cst_26 = arith.constant 0xFF800000 : f32
      %65 = vector.broadcast %cst_26 : f32 to vector<16x128xf32>
      %66 = arith.select %21, %64, %65 : vector<16x128xi1>, vector<16x128xf32>
      %cst_27 = arith.constant dense<0xFF800000> : vector<128xf32>
      %67 = vector.multi_reduction <maximumf>, %66, %cst_27 [0] : vector<16x128xf32> to vector<128xf32>
      %68 = vector.shape_cast %67 : vector<128xf32> to vector<1x128xf32>
      %c2 = arith.constant 2 : index
      %c0_28 = arith.constant 0 : index
      %69 = vector.load %arg5[%c2, %c0_28] : memref<16x128xf32, #tpu.memory_space<vmem>>, vector<1x128xf32>
      tpu.vector_store %arg5[%c2, %c0_28], %68 {strides = array<i32>} : memref<16x128xf32, #tpu.memory_space<vmem>>, vector<1x128xf32>,
      %c48 = arith.constant 48 : index
      %c0_29 = arith.constant 0 : index
      %70 = vector.load %arg6[%c48, %c0_29] : memref<256x128xf32, #tpu.memory_space<vmem>>, vector<16x128xf32>
      %cst_30 = arith.constant dense<0xFF800000> : vector<16xf32>
      %71 = vector.multi_reduction <maximumf>, %70, %cst_30 [1] : vector<16x128xf32> to vector<16xf32>
      %72 = vector.shape_cast %71 : vector<16xf32> to vector<16x1xf32>
      %73 = vector.broadcast %72 : vector<16x1xf32> to vector<16x128xf32>
      %74 = arith.subf %70, %73 : vector<16x128xf32>
      %75 = math.exp %74 : vector<16x128xf32>
      %cst_31 = arith.constant dense<0.000000e+00> : vector<16xf32>
      %76 = vector.multi_reduction <add>, %75, %cst_31 [1] : vector<16x128xf32> to vector<16xf32>
      %77 = vector.shape_cast %76 : vector<16xf32> to vector<16x1xf32>
      %78 = tpu.reciprocal %77 {approx = true} : vector<16x1xf32> -> vector<16x1xf32>
      %79 = vector.broadcast %78 : vector<16x1xf32> to vector<16x128xf32>
      %80 = arith.mulf %75, %79 : vector<16x128xf32>
      %cst_32 = arith.constant 0xFF800000 : f32
      %81 = vector.broadcast %cst_32 : f32 to vector<16x128xf32>
      %82 = arith.select %21, %80, %81 : vector<16x128xi1>, vector<16x128xf32>
      %cst_33 = arith.constant dense<0xFF800000> : vector<128xf32>
      %83 = vector.multi_reduction <maximumf>, %82, %cst_33 [0] : vector<16x128xf32> to vector<128xf32>
      %84 = vector.shape_cast %83 : vector<128xf32> to vector<1x128xf32>
      %c3 = arith.constant 3 : index
      %c0_34 = arith.constant 0 : index
      %85 = vector.load %arg5[%c3, %c0_34] : memref<16x128xf32, #tpu.memory_space<vmem>>, vector<1x128xf32>
      tpu.vector_store %arg5[%c3, %c0_34], %84 {strides = array<i32>} : memref<16x128xf32, #tpu.memory_space<vmem>>, vector<1x128xf32>,
      %c64 = arith.constant 64 : index
      %c0_35 = arith.constant 0 : index
      %86 = vector.load %arg6[%c64, %c0_35] : memref<256x128xf32, #tpu.memory_space<vmem>>, vector<16x128xf32>
      %cst_36 = arith.constant dense<0xFF800000> : vector<16xf32>
      %87 = vector.multi_reduction <maximumf>, %86, %cst_36 [1] : vector<16x128xf32> to vector<16xf32>
      %88 = vector.shape_cast %87 : vector<16xf32> to vector<16x1xf32>
      %89 = vector.broadcast %88 : vector<16x1xf32> to vector<16x128xf32>
      %90 = arith.subf %86, %89 : vector<16x128xf32>
      %91 = math.exp %90 : vector<16x128xf32>
      %cst_37 = arith.constant dense<0.000000e+00> : vector<16xf32>
      %92 = vector.multi_reduction <add>, %91, %cst_37 [1] : vector<16x128xf32> to vector<16xf32>
      %93 = vector.shape_cast %92 : vector<16xf32> to vector<16x1xf32>
      %94 = tpu.reciprocal %93 {approx = true} : vector<16x1xf32> -> vector<16x1xf32>
      %95 = vector.broadcast %94 : vector<16x1xf32> to vector<16x128xf32>
      %96 = arith.mulf %91, %95 : vector<16x128xf32>
      %cst_38 = arith.constant 0xFF800000 : f32
      %97 = vector.broadcast %cst_38 : f32 to vector<16x128xf32>
      %98 = arith.select %21, %96, %97 : vector<16x128xi1>, vector<16x128xf32>
      %cst_39 = arith.constant dense<0xFF800000> : vector<128xf32>
      %99 = vector.multi_reduction <maximumf>, %98, %cst_39 [0] : vector<16x128xf32> to vector<128xf32>
      %100 = vector.shape_cast %99 : vector<128xf32> to vector<1x128xf32>
      %c4 = arith.constant 4 : index
      %c0_40 = arith.constant 0 : index
      %101 = vector.load %arg5[%c4, %c0_40] : memref<16x128xf32, #tpu.memory_space<vmem>>, vector<1x128xf32>
      tpu.vector_store %arg5[%c4, %c0_40], %100 {strides = array<i32>} : memref<16x128xf32, #tpu.memory_space<vmem>>, vector<1x128xf32>,
      %c80 = arith.constant 80 : index
      %c0_41 = arith.constant 0 : index
      %102 = vector.load %arg6[%c80, %c0_41] : memref<256x128xf32, #tpu.memory_space<vmem>>, vector<16x128xf32>
      %cst_42 = arith.constant dense<0xFF800000> : vector<16xf32>
      %103 = vector.multi_reduction <maximumf>, %102, %cst_42 [1] : vector<16x128xf32> to vector<16xf32>
      %104 = vector.shape_cast %103 : vector<16xf32> to vector<16x1xf32>
      %105 = vector.broadcast %104 : vector<16x1xf32> to vector<16x128xf32>
      %106 = arith.subf %102, %105 : vector<16x128xf32>
      %107 = math.exp %106 : vector<16x128xf32>
      %cst_43 = arith.constant dense<0.000000e+00> : vector<16xf32>
      %108 = vector.multi_reduction <add>, %107, %cst_43 [1] : vector<16x128xf32> to vector<16xf32>
      %109 = vector.shape_cast %108 : vector<16xf32> to vector<16x1xf32>
      %110 = tpu.reciprocal %109 {approx = true} : vector<16x1xf32> -> vector<16x1xf32>
      %111 = vector.broadcast %110 : vector<16x1xf32> to vector<16x128xf32>
      %112 = arith.mulf %107, %111 : vector<16x128xf32>
      %cst_44 = arith.constant 0xFF800000 : f32
      %113 = vector.broadcast %cst_44 : f32 to vector<16x128xf32>
      %114 = arith.select %21, %112, %113 : vector<16x128xi1>, vector<16x128xf32>
      %cst_45 = arith.constant dense<0xFF800000> : vector<128xf32>
      %115 = vector.multi_reduction <maximumf>, %114, %cst_45 [0] : vector<16x128xf32> to vector<128xf32>
      %116 = vector.shape_cast %115 : vector<128xf32> to vector<1x128xf32>
      %c5 = arith.constant 5 : index
      %c0_46 = arith.constant 0 : index
      %117 = vector.load %arg5[%c5, %c0_46] : memref<16x128xf32, #tpu.memory_space<vmem>>, vector<1x128xf32>
      tpu.vector_store %arg5[%c5, %c0_46], %116 {strides = array<i32>} : memref<16x128xf32, #tpu.memory_space<vmem>>, vector<1x128xf32>,
      %c96 = arith.constant 96 : index
      %c0_47 = arith.constant 0 : index
      %118 = vector.load %arg6[%c96, %c0_47] : memref<256x128xf32, #tpu.memory_space<vmem>>, vector<16x128xf32>
      %cst_48 = arith.constant dense<0xFF800000> : vector<16xf32>
      %119 = vector.multi_reduction <maximumf>, %118, %cst_48 [1] : vector<16x128xf32> to vector<16xf32>
      %120 = vector.shape_cast %119 : vector<16xf32> to vector<16x1xf32>
      %121 = vector.broadcast %120 : vector<16x1xf32> to vector<16x128xf32>
      %122 = arith.subf %118, %121 : vector<16x128xf32>
      %123 = math.exp %122 : vector<16x128xf32>
      %cst_49 = arith.constant dense<0.000000e+00> : vector<16xf32>
      %124 = vector.multi_reduction <add>, %123, %cst_49 [1] : vector<16x128xf32> to vector<16xf32>
      %125 = vector.shape_cast %124 : vector<16xf32> to vector<16x1xf32>
      %126 = tpu.reciprocal %125 {approx = true} : vector<16x1xf32> -> vector<16x1xf32>
      %127 = vector.broadcast %126 : vector<16x1xf32> to vector<16x128xf32>
      %128 = arith.mulf %123, %127 : vector<16x128xf32>
      %cst_50 = arith.constant 0xFF800000 : f32
      %129 = vector.broadcast %cst_50 : f32 to vector<16x128xf32>
      %130 = arith.select %21, %128, %129 : vector<16x128xi1>, vector<16x128xf32>
      %cst_51 = arith.constant dense<0xFF800000> : vector<128xf32>
      %131 = vector.multi_reduction <maximumf>, %130, %cst_51 [0] : vector<16x128xf32> to vector<128xf32>
      %132 = vector.shape_cast %131 : vector<128xf32> to vector<1x128xf32>
      %c6 = arith.constant 6 : index
      %c0_52 = arith.constant 0 : index
      %133 = vector.load %arg5[%c6, %c0_52] : memref<16x128xf32, #tpu.memory_space<vmem>>, vector<1x128xf32>
      tpu.vector_store %arg5[%c6, %c0_52], %132 {strides = array<i32>} : memref<16x128xf32, #tpu.memory_space<vmem>>, vector<1x128xf32>,
      %c112 = arith.constant 112 : index
      %c0_53 = arith.constant 0 : index
      %134 = vector.load %arg6[%c112, %c0_53] : memref<256x128xf32, #tpu.memory_space<vmem>>, vector<16x128xf32>
      %cst_54 = arith.constant dense<0xFF800000> : vector<16xf32>
      %135 = vector.multi_reduction <maximumf>, %134, %cst_54 [1] : vector<16x128xf32> to vector<16xf32>
      %136 = vector.shape_cast %135 : vector<16xf32> to vector<16x1xf32>
      %137 = vector.broadcast %136 : vector<16x1xf32> to vector<16x128xf32>
      %138 = arith.subf %134, %137 : vector<16x128xf32>
      %139 = math.exp %138 : vector<16x128xf32>
      %cst_55 = arith.constant dense<0.000000e+00> : vector<16xf32>
      %140 = vector.multi_reduction <add>, %139, %cst_55 [1] : vector<16x128xf32> to vector<16xf32>
      %141 = vector.shape_cast %140 : vector<16xf32> to vector<16x1xf32>
      %142 = tpu.reciprocal %141 {approx = true} : vector<16x1xf32> -> vector<16x1xf32>
      %143 = vector.broadcast %142 : vector<16x1xf32> to vector<16x128xf32>
      %144 = arith.mulf %139, %143 : vector<16x128xf32>
      %cst_56 = arith.constant 0xFF800000 : f32
      %145 = vector.broadcast %cst_56 : f32 to vector<16x128xf32>
      %146 = arith.select %21, %144, %145 : vector<16x128xi1>, vector<16x128xf32>
      %cst_57 = arith.constant dense<0xFF800000> : vector<128xf32>
      %147 = vector.multi_reduction <maximumf>, %146, %cst_57 [0] : vector<16x128xf32> to vector<128xf32>
      %148 = vector.shape_cast %147 : vector<128xf32> to vector<1x128xf32>
      %c7 = arith.constant 7 : index
      %c0_58 = arith.constant 0 : index
      %149 = vector.load %arg5[%c7, %c0_58] : memref<16x128xf32, #tpu.memory_space<vmem>>, vector<1x128xf32>
      tpu.vector_store %arg5[%c7, %c0_58], %148 {strides = array<i32>} : memref<16x128xf32, #tpu.memory_space<vmem>>, vector<1x128xf32>,
      %c128 = arith.constant 128 : index
      %c0_59 = arith.constant 0 : index
      %150 = vector.load %arg6[%c128, %c0_59] : memref<256x128xf32, #tpu.memory_space<vmem>>, vector<16x128xf32>
      %cst_60 = arith.constant dense<0xFF800000> : vector<16xf32>
      %151 = vector.multi_reduction <maximumf>, %150, %cst_60 [1] : vector<16x128xf32> to vector<16xf32>
      %152 = vector.shape_cast %151 : vector<16xf32> to vector<16x1xf32>
      %153 = vector.broadcast %152 : vector<16x1xf32> to vector<16x128xf32>
      %154 = arith.subf %150, %153 : vector<16x128xf32>
      %155 = math.exp %154 : vector<16x128xf32>
      %cst_61 = arith.constant dense<0.000000e+00> : vector<16xf32>
      %156 = vector.multi_reduction <add>, %155, %cst_61 [1] : vector<16x128xf32> to vector<16xf32>
      %157 = vector.shape_cast %156 : vector<16xf32> to vector<16x1xf32>
      %158 = tpu.reciprocal %157 {approx = true} : vector<16x1xf32> -> vector<16x1xf32>
      %159 = vector.broadcast %158 : vector<16x1xf32> to vector<16x128xf32>
      %160 = arith.mulf %155, %159 : vector<16x128xf32>
      %cst_62 = arith.constant 0xFF800000 : f32
      %161 = vector.broadcast %cst_62 : f32 to vector<16x128xf32>
      %162 = arith.select %21, %160, %161 : vector<16x128xi1>, vector<16x128xf32>
      %cst_63 = arith.constant dense<0xFF800000> : vector<128xf32>
      %163 = vector.multi_reduction <maximumf>, %162, %cst_63 [0] : vector<16x128xf32> to vector<128xf32>
      %164 = vector.shape_cast %163 : vector<128xf32> to vector<1x128xf32>
      %c8 = arith.constant 8 : index
      %c0_64 = arith.constant 0 : index
      %165 = vector.load %arg5[%c8, %c0_64] : memref<16x128xf32, #tpu.memory_space<vmem>>, vector<1x128xf32>
      tpu.vector_store %arg5[%c8, %c0_64], %164 {strides = array<i32>} : memref<16x128xf32, #tpu.memory_space<vmem>>, vector<1x128xf32>,
      %c144 = arith.constant 144 : index
      %c0_65 = arith.constant 0 : index
      %166 = vector.load %arg6[%c144, %c0_65] : memref<256x128xf32, #tpu.memory_space<vmem>>, vector<16x128xf32>
      %cst_66 = arith.constant dense<0xFF800000> : vector<16xf32>
      %167 = vector.multi_reduction <maximumf>, %166, %cst_66 [1] : vector<16x128xf32> to vector<16xf32>
      %168 = vector.shape_cast %167 : vector<16xf32> to vector<16x1xf32>
      %169 = vector.broadcast %168 : vector<16x1xf32> to vector<16x128xf32>
      %170 = arith.subf %166, %169 : vector<16x128xf32>
      %171 = math.exp %170 : vector<16x128xf32>
      %cst_67 = arith.constant dense<0.000000e+00> : vector<16xf32>
      %172 = vector.multi_reduction <add>, %171, %cst_67 [1] : vector<16x128xf32> to vector<16xf32>
      %173 = vector.shape_cast %172 : vector<16xf32> to vector<16x1xf32>
      %174 = tpu.reciprocal %173 {approx = true} : vector<16x1xf32> -> vector<16x1xf32>
      %175 = vector.broadcast %174 : vector<16x1xf32> to vector<16x128xf32>
      %176 = arith.mulf %171, %175 : vector<16x128xf32>
      %cst_68 = arith.constant 0xFF800000 : f32
      %177 = vector.broadcast %cst_68 : f32 to vector<16x128xf32>
      %178 = arith.select %21, %176, %177 : vector<16x128xi1>, vector<16x128xf32>
      %cst_69 = arith.constant dense<0xFF800000> : vector<128xf32>
      %179 = vector.multi_reduction <maximumf>, %178, %cst_69 [0] : vector<16x128xf32> to vector<128xf32>
      %180 = vector.shape_cast %179 : vector<128xf32> to vector<1x128xf32>
      %c9 = arith.constant 9 : index
      %c0_70 = arith.constant 0 : index
      %181 = vector.load %arg5[%c9, %c0_70] : memref<16x128xf32, #tpu.memory_space<vmem>>, vector<1x128xf32>
      tpu.vector_store %arg5[%c9, %c0_70], %180 {strides = array<i32>} : memref<16x128xf32, #tpu.memory_space<vmem>>, vector<1x128xf32>,
      %c160 = arith.constant 160 : index
      %c0_71 = arith.constant 0 : index
      %182 = vector.load %arg6[%c160, %c0_71] : memref<256x128xf32, #tpu.memory_space<vmem>>, vector<16x128xf32>
      %cst_72 = arith.constant dense<0xFF800000> : vector<16xf32>
      %183 = vector.multi_reduction <maximumf>, %182, %cst_72 [1] : vector<16x128xf32> to vector<16xf32>
      %184 = vector.shape_cast %183 : vector<16xf32> to vector<16x1xf32>
      %185 = vector.broadcast %184 : vector<16x1xf32> to vector<16x128xf32>
      %186 = arith.subf %182, %185 : vector<16x128xf32>
      %187 = math.exp %186 : vector<16x128xf32>
      %cst_73 = arith.constant dense<0.000000e+00> : vector<16xf32>
      %188 = vector.multi_reduction <add>, %187, %cst_73 [1] : vector<16x128xf32> to vector<16xf32>
      %189 = vector.shape_cast %188 : vector<16xf32> to vector<16x1xf32>
      %190 = tpu.reciprocal %189 {approx = true} : vector<16x1xf32> -> vector<16x1xf32>
      %191 = vector.broadcast %190 : vector<16x1xf32> to vector<16x128xf32>
      %192 = arith.mulf %187, %191 : vector<16x128xf32>
      %cst_74 = arith.constant 0xFF800000 : f32
      %193 = vector.broadcast %cst_74 : f32 to vector<16x128xf32>
      %194 = arith.select %21, %192, %193 : vector<16x128xi1>, vector<16x128xf32>
      %cst_75 = arith.constant dense<0xFF800000> : vector<128xf32>
      %195 = vector.multi_reduction <maximumf>, %194, %cst_75 [0] : vector<16x128xf32> to vector<128xf32>
      %196 = vector.shape_cast %195 : vector<128xf32> to vector<1x128xf32>
      %c10 = arith.constant 10 : index
      %c0_76 = arith.constant 0 : index
      %197 = vector.load %arg5[%c10, %c0_76] : memref<16x128xf32, #tpu.memory_space<vmem>>, vector<1x128xf32>
      tpu.vector_store %arg5[%c10, %c0_76], %196 {strides = array<i32>} : memref<16x128xf32, #tpu.memory_space<vmem>>, vector<1x128xf32>,
      %c176 = arith.constant 176 : index
      %c0_77 = arith.constant 0 : index
      %198 = vector.load %arg6[%c176, %c0_77] : memref<256x128xf32, #tpu.memory_space<vmem>>, vector<16x128xf32>
      %cst_78 = arith.constant dense<0xFF800000> : vector<16xf32>
      %199 = vector.multi_reduction <maximumf>, %198, %cst_78 [1] : vector<16x128xf32> to vector<16xf32>
      %200 = vector.shape_cast %199 : vector<16xf32> to vector<16x1xf32>
      %201 = vector.broadcast %200 : vector<16x1xf32> to vector<16x128xf32>
      %202 = arith.subf %198, %201 : vector<16x128xf32>
      %203 = math.exp %202 : vector<16x128xf32>
      %cst_79 = arith.constant dense<0.000000e+00> : vector<16xf32>
      %204 = vector.multi_reduction <add>, %203, %cst_79 [1] : vector<16x128xf32> to vector<16xf32>
      %205 = vector.shape_cast %204 : vector<16xf32> to vector<16x1xf32>
      %206 = tpu.reciprocal %205 {approx = true} : vector<16x1xf32> -> vector<16x1xf32>
      %207 = vector.broadcast %206 : vector<16x1xf32> to vector<16x128xf32>
      %208 = arith.mulf %203, %207 : vector<16x128xf32>
      %cst_80 = arith.constant 0xFF800000 : f32
      %209 = vector.broadcast %cst_80 : f32 to vector<16x128xf32>
      %210 = arith.select %21, %208, %209 : vector<16x128xi1>, vector<16x128xf32>
      %cst_81 = arith.constant dense<0xFF800000> : vector<128xf32>
      %211 = vector.multi_reduction <maximumf>, %210, %cst_81 [0] : vector<16x128xf32> to vector<128xf32>
      %212 = vector.shape_cast %211 : vector<128xf32> to vector<1x128xf32>
      %c11 = arith.constant 11 : index
      %c0_82 = arith.constant 0 : index
      %213 = vector.load %arg5[%c11, %c0_82] : memref<16x128xf32, #tpu.memory_space<vmem>>, vector<1x128xf32>
      tpu.vector_store %arg5[%c11, %c0_82], %212 {strides = array<i32>} : memref<16x128xf32, #tpu.memory_space<vmem>>, vector<1x128xf32>,
      %c192 = arith.constant 192 : index
      %c0_83 = arith.constant 0 : index
      %214 = vector.load %arg6[%c192, %c0_83] : memref<256x128xf32, #tpu.memory_space<vmem>>, vector<16x128xf32>
      %cst_84 = arith.constant dense<0xFF800000> : vector<16xf32>
      %215 = vector.multi_reduction <maximumf>, %214, %cst_84 [1] : vector<16x128xf32> to vector<16xf32>
      %216 = vector.shape_cast %215 : vector<16xf32> to vector<16x1xf32>
      %217 = vector.broadcast %216 : vector<16x1xf32> to vector<16x128xf32>
      %218 = arith.subf %214, %217 : vector<16x128xf32>
      %219 = math.exp %218 : vector<16x128xf32>
      %cst_85 = arith.constant dense<0.000000e+00> : vector<16xf32>
      %220 = vector.multi_reduction <add>, %219, %cst_85 [1] : vector<16x128xf32> to vector<16xf32>
      %221 = vector.shape_cast %220 : vector<16xf32> to vector<16x1xf32>
      %222 = tpu.reciprocal %221 {approx = true} : vector<16x1xf32> -> vector<16x1xf32>
      %223 = vector.broadcast %222 : vector<16x1xf32> to vector<16x128xf32>
      %224 = arith.mulf %219, %223 : vector<16x128xf32>
      %cst_86 = arith.constant 0xFF800000 : f32
      %225 = vector.broadcast %cst_86 : f32 to vector<16x128xf32>
      %226 = arith.select %21, %224, %225 : vector<16x128xi1>, vector<16x128xf32>
      %cst_87 = arith.constant dense<0xFF800000> : vector<128xf32>
      %227 = vector.multi_reduction <maximumf>, %226, %cst_87 [0] : vector<16x128xf32> to vector<128xf32>
      %228 = vector.shape_cast %227 : vector<128xf32> to vector<1x128xf32>
      %c12 = arith.constant 12 : index
      %c0_88 = arith.constant 0 : index
      %229 = vector.load %arg5[%c12, %c0_88] : memref<16x128xf32, #tpu.memory_space<vmem>>, vector<1x128xf32>
      tpu.vector_store %arg5[%c12, %c0_88], %228 {strides = array<i32>} : memref<16x128xf32, #tpu.memory_space<vmem>>, vector<1x128xf32>,
      %c208 = arith.constant 208 : index
      %c0_89 = arith.constant 0 : index
      %230 = vector.load %arg6[%c208, %c0_89] : memref<256x128xf32, #tpu.memory_space<vmem>>, vector<16x128xf32>
      %cst_90 = arith.constant dense<0xFF800000> : vector<16xf32>
      %231 = vector.multi_reduction <maximumf>, %230, %cst_90 [1] : vector<16x128xf32> to vector<16xf32>
      %232 = vector.shape_cast %231 : vector<16xf32> to vector<16x1xf32>
      %233 = vector.broadcast %232 : vector<16x1xf32> to vector<16x128xf32>
      %234 = arith.subf %230, %233 : vector<16x128xf32>
      %235 = math.exp %234 : vector<16x128xf32>
      %cst_91 = arith.constant dense<0.000000e+00> : vector<16xf32>
      %236 = vector.multi_reduction <add>, %235, %cst_91 [1] : vector<16x128xf32> to vector<16xf32>
      %237 = vector.shape_cast %236 : vector<16xf32> to vector<16x1xf32>
      %238 = tpu.reciprocal %237 {approx = true} : vector<16x1xf32> -> vector<16x1xf32>
      %239 = vector.broadcast %238 : vector<16x1xf32> to vector<16x128xf32>
      %240 = arith.mulf %235, %239 : vector<16x128xf32>
      %cst_92 = arith.constant 0xFF800000 : f32
      %241 = vector.broadcast %cst_92 : f32 to vector<16x128xf32>
      %242 = arith.select %21, %240, %241 : vector<16x128xi1>, vector<16x128xf32>
      %cst_93 = arith.constant dense<0xFF800000> : vector<128xf32>
      %243 = vector.multi_reduction <maximumf>, %242, %cst_93 [0] : vector<16x128xf32> to vector<128xf32>
      %244 = vector.shape_cast %243 : vector<128xf32> to vector<1x128xf32>
      %c13 = arith.constant 13 : index
      %c0_94 = arith.constant 0 : index
      %245 = vector.load %arg5[%c13, %c0_94] : memref<16x128xf32, #tpu.memory_space<vmem>>, vector<1x128xf32>
      tpu.vector_store %arg5[%c13, %c0_94], %244 {strides = array<i32>} : memref<16x128xf32, #tpu.memory_space<vmem>>, vector<1x128xf32>,
      %c224 = arith.constant 224 : index
      %c0_95 = arith.constant 0 : index
      %246 = vector.load %arg6[%c224, %c0_95] : memref<256x128xf32, #tpu.memory_space<vmem>>, vector<16x128xf32>
      %cst_96 = arith.constant dense<0xFF800000> : vector<16xf32>
      %247 = vector.multi_reduction <maximumf>, %246, %cst_96 [1] : vector<16x128xf32> to vector<16xf32>
      %248 = vector.shape_cast %247 : vector<16xf32> to vector<16x1xf32>
      %249 = vector.broadcast %248 : vector<16x1xf32> to vector<16x128xf32>
      %250 = arith.subf %246, %249 : vector<16x128xf32>
      %251 = math.exp %250 : vector<16x128xf32>
      %cst_97 = arith.constant dense<0.000000e+00> : vector<16xf32>
      %252 = vector.multi_reduction <add>, %251, %cst_97 [1] : vector<16x128xf32> to vector<16xf32>
      %253 = vector.shape_cast %252 : vector<16xf32> to vector<16x1xf32>
      %254 = tpu.reciprocal %253 {approx = true} : vector<16x1xf32> -> vector<16x1xf32>
      %255 = vector.broadcast %254 : vector<16x1xf32> to vector<16x128xf32>
      %256 = arith.mulf %251, %255 : vector<16x128xf32>
      %cst_98 = arith.constant 0xFF800000 : f32
      %257 = vector.broadcast %cst_98 : f32 to vector<16x128xf32>
      %258 = arith.select %21, %256, %257 : vector<16x128xi1>, vector<16x128xf32>
      %cst_99 = arith.constant dense<0xFF800000> : vector<128xf32>
      %259 = vector.multi_reduction <maximumf>, %258, %cst_99 [0] : vector<16x128xf32> to vector<128xf32>
      %260 = vector.shape_cast %259 : vector<128xf32> to vector<1x128xf32>
      %c14 = arith.constant 14 : index
      %c0_100 = arith.constant 0 : index
      %261 = vector.load %arg5[%c14, %c0_100] : memref<16x128xf32, #tpu.memory_space<vmem>>, vector<1x128xf32>
      tpu.vector_store %arg5[%c14, %c0_100], %260 {strides = array<i32>} : memref<16x128xf32, #tpu.memory_space<vmem>>, vector<1x128xf32>,
      %c240 = arith.constant 240 : index
      %c0_101 = arith.constant 0 : index
      %262 = vector.load %arg6[%c240, %c0_101] : memref<256x128xf32, #tpu.memory_space<vmem>>, vector<16x128xf32>
      %cst_102 = arith.constant dense<0xFF800000> : vector<16xf32>
      %263 = vector.multi_reduction <maximumf>, %262, %cst_102 [1] : vector<16x128xf32> to vector<16xf32>
      %264 = vector.shape_cast %263 : vector<16xf32> to vector<16x1xf32>
      %265 = vector.broadcast %264 : vector<16x1xf32> to vector<16x128xf32>
      %266 = arith.subf %262, %265 : vector<16x128xf32>
      %267 = math.exp %266 : vector<16x128xf32>
      %cst_103 = arith.constant dense<0.000000e+00> : vector<16xf32>
      %268 = vector.multi_reduction <add>, %267, %cst_103 [1] : vector<16x128xf32> to vector<16xf32>
      %269 = vector.shape_cast %268 : vector<16xf32> to vector<16x1xf32>
      %270 = tpu.reciprocal %269 {approx = true} : vector<16x1xf32> -> vector<16x1xf32>
      %271 = vector.broadcast %270 : vector<16x1xf32> to vector<16x128xf32>
      %272 = arith.mulf %267, %271 : vector<16x128xf32>
      %cst_104 = arith.constant 0xFF800000 : f32
      %273 = vector.broadcast %cst_104 : f32 to vector<16x128xf32>
      %274 = arith.select %21, %272, %273 : vector<16x128xi1>, vector<16x128xf32>
      %cst_105 = arith.constant dense<0xFF800000> : vector<128xf32>
      %275 = vector.multi_reduction <maximumf>, %274, %cst_105 [0] : vector<16x128xf32> to vector<128xf32>
      %276 = vector.shape_cast %275 : vector<128xf32> to vector<1x128xf32>
      %c15 = arith.constant 15 : index
      %c0_106 = arith.constant 0 : index
      %277 = vector.load %arg5[%c15, %c0_106] : memref<16x128xf32, #tpu.memory_space<vmem>>, vector<1x128xf32>
      tpu.vector_store %arg5[%c15, %c0_106], %276 {strides = array<i32>} : memref<16x128xf32, #tpu.memory_space<vmem>>, vector<1x128xf32>,
    } else {
    }
    return
  }
  func.func @transform_0(%arg0: i32, %arg1: i32) -> (i32, i32) {
    %c0_i32 = arith.constant 0 : i32
    %c0_i32_0 = arith.constant 0 : i32
    return %arg0, %c0_i32 : i32, i32
  }
  func.func @transform_1(%arg0: i32, %arg1: i32) -> (i32, i32) {
    %c0_i32 = arith.constant 0 : i32
    %c0_i32_0 = arith.constant 0 : i32
    %c0_i32_1 = arith.constant 0 : i32
    return %c0_i32, %c0_i32_0 : i32, i32
  }
  func.func @transform_2(%arg0: i32, %arg1: i32) -> (i32, i32) {
    %c0_i32 = arith.constant 0 : i32
    %c0_i32_0 = arith.constant 0 : i32
    %c0_i32_1 = arith.constant 0 : i32
    return %c0_i32, %c0_i32_0 : i32, i32
  }
  func.func @transform_3(%arg0: i32, %arg1: i32) -> (i32, i32) {
    %c0_i32 = arith.constant 0 : i32
    %c0_i32_0 = arith.constant 0 : i32
    return %arg0, %c0_i32 : i32, i32
  }
}

</mosaic_0001>

<llo_original>
// kernel: tpu_custom_call.1
$region0: #{tpu_custom_call.1}
  #allocation0 [shape = 'u32[]', space=smem, size = 0x4, offset = 0x4, fixed_abs, tag = 'smem constant byte address 0x4 - core index']
  #allocation1 [shape = 'u32[72,128]{1,0:T(1,128)}', space=vmem, size = 0x9000, scoped, tag = 'internal scratch']
  #allocation2 [shape = 'f32[256,128]{1,0:T(8,128)}', space=vmem, size = 0x20000, scoped, tag = 'scratch operand']
  %s0 = inlined_call_operand.hbm [shape: bf16[512,128], index: 0, kind: input, shape index: {}]
  %s1 = inlined_call_operand.hbm [shape: bf16[128,512], index: 1, kind: input, shape index: {}]
  %s2 = inlined_call_operand.hbm [shape: f32[1,512], index: 2, kind: input, shape index: {}]
  %s3 = inlined_call_operand.hbm [shape: f32[32,128], index: 3, kind: output, shape index: {}]
  %s4 = sld [smem:[#allocation0]]
  $region65: #{tpu_custom_call.1} parent=0
    _
  %s6 = ssub.s32 1, %s4
  %s7 = scalar_select 0, %s6, %s4
  $region1: #{tpu_custom_call.1} parent=0
    #allocation3 [shape = 'u8[131072]{0}', space=vmem, size = 0x20000, scoped, tag = 'input window, operand 0']
    #allocation4 [shape = 's32[2]{0}', space=sflag, size = 0x8, scoped, tag = 'scoped memory for tpu_custom_call.1']
    #allocation5 [shape = 's32[2]{0}', space=sflag, size = 0x8, scoped, tag = 'scoped memory for tpu_custom_call.1']
    #allocation6 [shape = 'u8[131072]{0}', space=vmem, size = 0x20000, scoped, tag = 'input window, operand 1, single buffered']
    #allocation7 [shape = 's32[1]{0}', space=sflag, size = 0x4, scoped, tag = 'scoped memory for tpu_custom_call.1']
    #allocation8 [shape = 'u8[2048]{0}', space=vmem, size = 0x800, scoped, tag = 'input window, operand 2, single buffered']
    #allocation9 [shape = 'u8[16384]{0}', space=vmem, size = 0x4000, scoped, tag = 'output window, operand 0']
    %8 = vsyncpa [#allocation4], 0
    %s9 = scalar_lea.sflag [#allocation4], 1
    %10 = vsyncpa %s9, 0
    %11 = vsyncpa [#allocation7], 0
    %12 = vsyncpa [#allocation5], 0
    %s13 = scalar_lea.sflag [#allocation5], 1
    %14 = vsyncpa %s13, 0
    loop: start=0, step=1, limit=10
    $region2: #{tpu_custom_call.1} parent=1 // loop_pre_header
      _
    $region3: #{tpu_custom_call.1} parent=1 // loop_header
      %s16 = sphi 0, %s20
      %p17 = scmp.ge.s32.totalorder %s16, 10
      %s23 = sphi 0, %s35
      %s24 = sphi 0, %s31
      %s25 = sphi 0, %s23
      %s26 = sphi 0, %s24
      %s27 = sphi 0, %s25
      %s28 = sphi 0, %s26
      %s38 = sphi 0, %s40
      %s41 = sphi 0, %s38
      %s42 = sphi 0, %s41
      %s58 = sphi 0, %s42
      %s62 = sphi 0, %s62
      %s64 = sphi 0, %s62
      %s65 = sphi 0, %s64
      %s79 = sphi 0, %s65
      %s83 = sphi 0, %s83
      %s85 = sphi 0, %s83
      %s86 = sphi 0, %s85
      %s100 = sphi 0, %s86
      %s106 = sphi 0, %s108
      %s109 = sphi 0, %s106
      %s110 = sphi 0, %s109
      %s126 = sphi 0, %s110
    $region4: #{tpu_custom_call.1} parent=1 // loop_header_branch
      %19 = sbr.rel (%p17) target = $region8
    $region5: #{tpu_custom_call.1} parent=1 // loop_body
      %s21 = ssub.s32 %s16, 1
      %s22 = ssub.s32 %s16, 2
      %s29 = sadd.s32 1, %s24
      %p30 = scmp.ge.s32.totalorder %s29, 4
      %s31 = scalar_select %p30, 0, %s29
      %s32 = sadd.s32 1, %s23
      %s33 = scalar_select %p30, %s32, %s23
      %p34 = scmp.ge.s32.totalorder %s33, 2
      %s35 = scalar_select %p34, 0, %s33
      %s36 = ssub.s32 %s23, %s35
      %p37 = scmp.eq.s32.totalorder %s36, 0
      %s39 = sadd.s32 %s38, 1
      %s40 = scalar_select %p37, %s38, %s39
      %p43 = pneg %p37
      %p44 = scmp.eq.s32.totalorder %s16, 7
      %p45 = por %p43, %p44
      %p46 = scmp.ne.s32.totalorder %s38, %s41
      %p47 = scmp.eq.s32.totalorder %s16, 0
      %p48 = por %p46, %p47
      %p49 = scmp.ne.s32.totalorder %s38, %s41
      %p50 = scmp.eq.s32.totalorder %s21, 7
      %p51 = por %p49, %p50
      %p52 = scmp.ne.s32.totalorder %s41, %s42
      %p53 = scmp.eq.s32.totalorder %s21, 0
      %p54 = por %p52, %p53
      %p55 = scmp.ne.s32.totalorder %s41, %s42
      %p56 = scmp.eq.s32.totalorder %s22, 7
      %p57 = por %p55, %p56
      %p59 = scmp.ne.s32.totalorder %s42, %s58
      %p60 = scmp.eq.s32.totalorder %s22, 0
      %p61 = por %p59, %p60
      %s63 = sadd.s32 %s62, 1
      %p66 = scmp.eq.s32.totalorder %s16, 7
      %p67 = scmp.ne.s32.totalorder %s62, %s64
      %p68 = scmp.eq.s32.totalorder %s16, 0
      %p69 = por %p67, %p68
      %p70 = scmp.ne.s32.totalorder %s62, %s64
      %p71 = scmp.eq.s32.totalorder %s21, 7
      %p72 = por %p70, %p71
      %p73 = scmp.ne.s32.totalorder %s64, %s65
      %p74 = scmp.eq.s32.totalorder %s21, 0
      %p75 = por %p73, %p74
      %p76 = scmp.ne.s32.totalorder %s64, %s65
      %p77 = scmp.eq.s32.totalorder %s22, 7
      %p78 = por %p76, %p77
      %p80 = scmp.ne.s32.totalorder %s65, %s79
      %p81 = scmp.eq.s32.totalorder %s22, 0
      %p82 = por %p80, %p81
      %s84 = sadd.s32 %s83, 1
      %p87 = scmp.eq.s32.totalorder %s16, 7
      %p88 = scmp.ne.s32.totalorder %s83, %s85
      %p89 = scmp.eq.s32.totalorder %s16, 0
      %p90 = por %p88, %p89
      %p91 = scmp.ne.s32.totalorder %s83, %s85
      %p92 = scmp.eq.s32.totalorder %s21, 7
      %p93 = por %p91, %p92
      %p94 = scmp.ne.s32.totalorder %s85, %s86
      %p95 = scmp.eq.s32.totalorder %s21, 0
      %p96 = por %p94, %p95
      %p97 = scmp.ne.s32.totalorder %s85, %s86
      %p98 = scmp.eq.s32.totalorder %s22, 7
      %p99 = por %p97, %p98
      %p101 = scmp.ne.s32.totalorder %s86, %s100
      %p102 = scmp.eq.s32.totalorder %s22, 0
      %p103 = por %p101, %p102
      %s104 = ssub.s32 %s23, %s35
      %p105 = scmp.eq.s32.totalorder %s104, 0
      %s107 = sadd.s32 %s106, 1
      %s108 = scalar_select %p105, %s106, %s107
      %p111 = pneg %p105
      %p112 = scmp.eq.s32.totalorder %s16, 7
      %p113 = por %p111, %p112
      %p114 = scmp.ne.s32.totalorder %s106, %s109
      %p115 = scmp.eq.s32.totalorder %s16, 0
      %p116 = por %p114, %p115
      %p117 = scmp.ne.s32.totalorder %s106, %s109
      %p118 = scmp.eq.s32.totalorder %s21, 7
      %p119 = por %p117, %p118
      %p120 = scmp.ne.s32.totalorder %s109, %s110
      %p121 = scmp.eq.s32.totalorder %s21, 0
      %p122 = por %p120, %p121
      %p123 = scmp.ne.s32.totalorder %s109, %s110
      %p124 = scmp.eq.s32.totalorder %s22, 7
      %p125 = por %p123, %p124
      %p127 = scmp.ne.s32.totalorder %s110, %s126
      %p128 = scmp.eq.s32.totalorder %s22, 0
      %p129 = por %p127, %p128
      %p130 = scmp.le.s32.totalorder 1, %s16
      %p131 = scmp.lt.s32.totalorder %s16, 9
      %p132 = pnand %p130, %p131
      %p133 = pneg %p132
      // Predicated region
      $region9: #{tpu_custom_call.1} parent=5 // pred_check
        _
      $region10: #{tpu_custom_call.1} parent=5 // pred_check_branch
        %135 = sbr.rel (%p132) target = $region12
      $region11: #{tpu_custom_call.1} parent=5 // pred_region
        %s136 = ssub.s32 %s16, 1
        // Predicated region
        $region13: #{tpu_custom_call.1} parent=11 // pred_check
          %p137 = pneg %p75
        $region14: #{tpu_custom_call.1} parent=11 // pred_check_branch
          %139 = sbr.rel (%p137) target = $region16
        $region15: #{tpu_custom_call.1} parent=11 // pred_region
          %141 = vsyncadd [#allocation7], 0
          %s142 = sshll.u32 %s1, 4
          %s143 = int_to_ptr.hbm [resolvable:$true] %s142
          %s144 = sshll.u32 [#allocation6], 4
          %s145 = int_to_ptr.vmem [resolvable:$true] %s144
          %150 = dma.hbm_to_vmem [thread:$0]  %s143, 4096, %s145, [#allocation7], 256, 256, 16
        $region16: #{tpu_custom_call.1} parent=11 // pred_fallthru
          _
        // Predicated region
        $region17: #{tpu_custom_call.1} parent=11 // pred_check
          %p151 = pneg %p96
        $region18: #{tpu_custom_call.1} parent=11 // pred_check_branch
          %153 = sbr.rel (%p151) target = $region20
        $region19: #{tpu_custom_call.1} parent=11 // pred_region
          %155 = vsyncadd [#allocation7], 0
          %s157 = sshll.u32 %s2, 4
          %s158 = int_to_ptr.hbm [resolvable:$true] %s157
          %s159 = sshll.u32 [#allocation8], 4
          %s160 = int_to_ptr.vmem [resolvable:$true] %s159
          %162 = dma.hbm_to_vmem [thread:$0]  %s158, 64, %s160, [#allocation7]
        $region20: #{tpu_custom_call.1} parent=11 // pred_fallthru
          _
      $region12: #{tpu_custom_call.1} parent=5 // pred_fallthru
        _
      %p163 = scmp.lt.s32.totalorder %s16, 8
      // Predicated region
      $region21: #{tpu_custom_call.1} parent=5 // pred_check
        %p164 = pneg %p163
      $region22: #{tpu_custom_call.1} parent=5 // pred_check_branch
        %166 = sbr.rel (%p164) target = $region24
      $region23: #{tpu_custom_call.1} parent=5 // pred_region
        // Predicated region
        $region25: #{tpu_custom_call.1} parent=23 // pred_check
          %p167 = pneg %p48
        $region26: #{tpu_custom_call.1} parent=23 // pred_check_branch
          %169 = sbr.rel (%p167) target = $region28
        $region27: #{tpu_custom_call.1} parent=23 // pred_region
          %s170 = sand.u32 %s38, 1
          %s171 = scalar_lea.sflag [#allocation4], %s170
          %s172 = sand.u32 %s38, 1
          %s173 = smul.addr %s172, 128
          %s174 = scalar_lea.vmem [#allocation3], %s173
          %s175 = smul.u32 32, %s23
          %177 = vsyncadd %s171, 0
          %s178 = smul.addr %s175, 4
          %s179 = scalar_lea.hbm %s0, %s178
          %s180 = sshll.u32 %s179, 4
          %s181 = int_to_ptr.hbm [resolvable:$true] %s180
          %s182 = sshll.u32 %s174, 4
          %s183 = int_to_ptr.vmem [resolvable:$true] %s182
          %188 = dma.hbm_to_vmem [thread:$0]  %s181, 2048, %s183, %s171, 64, 64, 4
        $region28: #{tpu_custom_call.1} parent=23 // pred_fallthru
          _
      $region24: #{tpu_custom_call.1} parent=5 // pred_fallthru
        _
      %p189 = scmp.le.s32.totalorder 1, %s16
      %p190 = scmp.lt.s32.totalorder %s16, 9
      %p191 = pnand %p189, %p190
      %p192 = pneg %p191
      // Predicated region
      $region29: #{tpu_custom_call.1} parent=5 // pred_check
        _
      $region30: #{tpu_custom_call.1} parent=5 // pred_check_branch
        %194 = sbr.rel (%p191) target = $region32
      $region31: #{tpu_custom_call.1} parent=5 // pred_region
        %s195 = ssub.s32 %s16, 1
        %s196 = sand.u32 %s41, 1
        %s197 = scalar_lea.sflag [#allocation4], %s196
        %s198 = sand.u32 %s41, 1
        %s199 = smul.addr %s198, 128
        %s200 = scalar_lea.vmem [#allocation3], %s199
        // Predicated region
        $region33: #{tpu_custom_call.1} parent=31 // pred_check
          %p201 = pneg %p54
        $region34: #{tpu_custom_call.1} parent=31 // pred_check_branch
          %203 = sbr.rel (%p201) target = $region36
        $region35: #{tpu_custom_call.1} parent=31 // pred_region
          %205 = dma.done %s197, 2048
        $region36: #{tpu_custom_call.1} parent=31 // pred_fallthru
          _
        // Predicated region
        $region37: #{tpu_custom_call.1} parent=31 // pred_check
          %p206 = pneg %p75
        $region38: #{tpu_custom_call.1} parent=31 // pred_check_branch
          %208 = sbr.rel (%p206) target = $region40
        $region39: #{tpu_custom_call.1} parent=31 // pred_region
          %210 = dma.done [#allocation7], 4096
        $region40: #{tpu_custom_call.1} parent=31 // pred_fallthru
          _
        // Predicated region
        $region41: #{tpu_custom_call.1} parent=31 // pred_check
          %p211 = pneg %p96
        $region42: #{tpu_custom_call.1} parent=31 // pred_check_branch
          %213 = sbr.rel (%p211) target = $region44
        $region43: #{tpu_custom_call.1} parent=31 // pred_region
          %215 = dma.done [#allocation7], 64
        $region44: #{tpu_custom_call.1} parent=31 // pred_fallthru
          _
        %s216 = sand.u32 %s41, 1
        %s217 = scalar_lea.sflag [#allocation4], %s216
        %s218 = sand.u32 %s41, 1
        %s219 = smul.addr %s218, 128
        %s220 = scalar_lea.vmem [#allocation3], %s219
        %p221 = pneg %p54
        %p222 = pneg %p51
        %p223 = pneg %p75
        %p224 = pneg %p72
        %p225 = pneg %p96
        %p226 = pneg %p93
        %p227 = pneg %p122
        %p228 = pneg %p119
        %s229 = sand.u32 %s109, 1
        %s230 = scalar_lea.sflag [#allocation5], %s229
        %s231 = sand.u32 %s109, 1
        %s232 = smul.addr %s231, 16
        %s233 = scalar_lea.vmem [#allocation9], %s232
        %s234 = smul.u32 32, %s25
        %s235 = smul.u32 2, %s25
        %p236 = scmp.eq.s32.totalorder %s26, 0
        // Predicated region
        $region45: #{tpu_custom_call.1} parent=31 // pred_check
          %p237 = pneg %p236
        $region46: #{tpu_custom_call.1} parent=31 // pred_check_branch
          %239 = sbr.rel (%p237) target = $region48
        $region47: #{tpu_custom_call.1} parent=31 // pred_region
          %240 = vst [vmem:[#allocation2] sm:$0xff] -inf
          %241 = vst [vmem:[#allocation2 + $0x8] sm:$0xff] -inf
          %242 = vst [vmem:[#allocation2 + $0x10] sm:$0xff] -inf
          %243 = vst [vmem:[#allocation2 + $0x18] sm:$0xff] -inf
          %244 = vst [vmem:[#allocation2 + $0x20] sm:$0xff] -inf
          %245 = vst [vmem:[#allocation2 + $0x28] sm:$0xff] -inf
          %246 = vst [vmem:[#allocation2 + $0x30] sm:$0xff] -inf
          %247 = vst [vmem:[#allocation2 + $0x38] sm:$0xff] -inf
          %248 = vst [vmem:[#allocation2 + $0x40] sm:$0xff] -inf
          %249 = vst [vmem:[#allocation2 + $0x48] sm:$0xff] -inf
          %250 = vst [vmem:[#allocation2 + $0x50] sm:$0xff] -inf
          %251 = vst [vmem:[#allocation2 + $0x58] sm:$0xff] -inf
          %252 = vst [vmem:[#allocation2 + $0x60] sm:$0xff] -inf
          %253 = vst [vmem:[#allocation2 + $0x68] sm:$0xff] -inf
          %254 = vst [vmem:[#allocation2 + $0x70] sm:$0xff] -inf
          %255 = vst [vmem:[#allocation2 + $0x78] sm:$0xff] -inf
          %256 = vst [vmem:[#allocation2 + $0x80] sm:$0xff] -inf
          %257 = vst [vmem:[#allocation2 + $0x88] sm:$0xff] -inf
          %258 = vst [vmem:[#allocation2 + $0x90] sm:$0xff] -inf
          %259 = vst [vmem:[#allocation2 + $0x98] sm:$0xff] -inf
          %260 = vst [vmem:[#allocation2 + $0xa0] sm:$0xff] -inf
          %261 = vst [vmem:[#allocation2 + $0xa8] sm:$0xff] -inf
          %262 = vst [vmem:[#allocation2 + $0xb0] sm:$0xff] -inf
          %263 = vst [vmem:[#allocation2 + $0xb8] sm:$0xff] -inf
          %264 = vst [vmem:[#allocation2 + $0xc0] sm:$0xff] -inf
          %265 = vst [vmem:[#allocation2 + $0xc8] sm:$0xff] -inf
          %266 = vst [vmem:[#allocation2 + $0xd0] sm:$0xff] -inf
          %267 = vst [vmem:[#allocation2 + $0xd8] sm:$0xff] -inf
          %268 = vst [vmem:[#allocation2 + $0xe0] sm:$0xff] -inf
          %269 = vst [vmem:[#allocation2 + $0xe8] sm:$0xff] -inf
          %270 = vst [vmem:[#allocation2 + $0xf0] sm:$0xff] -inf
          %271 = vst [vmem:[#allocation2 + $0xf8] sm:$0xff] -inf
        $region48: #{tpu_custom_call.1} parent=31 // pred_fallthru
          _
        %s272 = smul.u32 %s26, 128
        %s273 = sshra.s32 %s272, 7
        %s274 = sand.u32 %s272, 127
        %s275 = smul.addr %s273, 4
        %s276 = scalar_lea.vmem [#allocation6], %s275
        %v277 = vld [vmem:[%s276] sm:$0xf]
        %v278 = vld [vmem:[%s276 + $0x10] sm:$0xf]
        %v279 = vld [vmem:[%s276 + $0x20] sm:$0xf]
        %v280 = vld [vmem:[%s276 + $0x30] sm:$0xf]
        %v281 = vld [vmem:[%s276 + $0x40] sm:$0xf]
        %v282 = vld [vmem:[%s276 + $0x50] sm:$0xf]
        %v283 = vld [vmem:[%s276 + $0x60] sm:$0xf]
        %v284 = vld [vmem:[%s276 + $0x70] sm:$0xf]
        %v285 = vld [vmem:[%s276 + $0x80] sm:$0xf]
        %v286 = vld [vmem:[%s276 + $0x90] sm:$0xf]
        %v287 = vld [vmem:[%s276 + $0xa0] sm:$0xf]
        %v288 = vld [vmem:[%s276 + $0xb0] sm:$0xf]
        %v289 = vld [vmem:[%s276 + $0xc0] sm:$0xf]
        %v290 = vld [vmem:[%s276 + $0xd0] sm:$0xf]
        %v291 = vld [vmem:[%s276 + $0xe0] sm:$0xf]
        %v292 = vld [vmem:[%s276 + $0xf0] sm:$0xf]
        %s293 = scalar_lea.vmem [#allocation8], %s273
        %v294 = vld [vmem:[%s293] sm:$0x1]
        %v295 = vld [vmem:[%s200] sm:$0xf]
        %v296 = vld [vmem:[%s200 + $0x4] sm:$0xf]
        %v297 = vld [vmem:[%s200 + $0x8] sm:$0xf]
        %v298 = vld [vmem:[%s200 + $0xc] sm:$0xf]
        %v299 = vld [vmem:[%s200 + $0x10] sm:$0xf]
        %v300 = vld [vmem:[%s200 + $0x14] sm:$0xf]
        %v301 = vld [vmem:[%s200 + $0x18] sm:$0xf]
        %v302 = vld [vmem:[%s200 + $0x1c] sm:$0xf]
        %v303 = vld [vmem:[%s200 + $0x20] sm:$0xf]
        %v304 = vld [vmem:[%s200 + $0x24] sm:$0xf]
        %v305 = vld [vmem:[%s200 + $0x28] sm:$0xf]
        %v306 = vld [vmem:[%s200 + $0x2c] sm:$0xf]
        %v307 = vld [vmem:[%s200 + $0x30] sm:$0xf]
        %v308 = vld [vmem:[%s200 + $0x34] sm:$0xf]
        %v309 = vld [vmem:[%s200 + $0x38] sm:$0xf]
        %v310 = vld [vmem:[%s200 + $0x3c] sm:$0xf]
        %v311 = vld [vmem:[%s200 + $0x40] sm:$0xf]
        %v312 = vld [vmem:[%s200 + $0x44] sm:$0xf]
        %v313 = vld [vmem:[%s200 + $0x48] sm:$0xf]
        %v314 = vld [vmem:[%s200 + $0x4c] sm:$0xf]
        %v315 = vld [vmem:[%s200 + $0x50] sm:$0xf]
        %v316 = vld [vmem:[%s200 + $0x54] sm:$0xf]
        %v317 = vld [vmem:[%s200 + $0x58] sm:$0xf]
        %v318 = vld [vmem:[%s200 + $0x5c] sm:$0xf]
        %v319 = vld [vmem:[%s200 + $0x60] sm:$0xf]
        %v320 = vld [vmem:[%s200 + $0x64] sm:$0xf]
        %v321 = vld [vmem:[%s200 + $0x68] sm:$0xf]
        %v322 = vld [vmem:[%s200 + $0x6c] sm:$0xf]
        %v323 = vld [vmem:[%s200 + $0x70] sm:$0xf]
        %v324 = vld [vmem:[%s200 + $0x74] sm:$0xf]
        %v325 = vld [vmem:[%s200 + $0x78] sm:$0xf]
        %v326 = vld [vmem:[%s200 + $0x7c] sm:$0xf]
        %v328 = vperm.slane %v294, 0
        %v362 = vunpack.c.l.b16 %v295
        %v363 = vunpack.c.l.b16 %v296
        %v364 = vunpack.c.l.b16 %v297
        %v365 = vunpack.c.l.b16 %v298
        %v366 = vunpack.c.l.b16 %v299
        %v367 = vunpack.c.l.b16 %v300
        %v368 = vunpack.c.l.b16 %v301
        %v369 = vunpack.c.l.b16 %v302
        %v370 = vunpack.c.l.b16 %v303
        %v371 = vunpack.c.l.b16 %v304
        %v372 = vunpack.c.l.b16 %v305
        %v373 = vunpack.c.l.b16 %v306
        %v374 = vunpack.c.l.b16 %v307
        %v375 = vunpack.c.l.b16 %v308
        %v376 = vunpack.c.l.b16 %v309
        %v377 = vunpack.c.l.b16 %v310
        %v378 = vunpack.c.l.b16 %v311
        %v379 = vunpack.c.l.b16 %v312
        %v380 = vunpack.c.l.b16 %v313
        %v381 = vunpack.c.l.b16 %v314
        %v382 = vunpack.c.l.b16 %v315
        %v383 = vunpack.c.l.b16 %v316
        %v384 = vunpack.c.l.b16 %v317
        %v385 = vunpack.c.l.b16 %v318
        %v386 = vunpack.c.l.b16 %v319
        %v387 = vunpack.c.l.b16 %v320
        %v388 = vunpack.c.l.b16 %v321
        %v389 = vunpack.c.l.b16 %v322
        %v390 = vunpack.c.l.b16 %v323
        %v391 = vunpack.c.l.b16 %v324
        %v392 = vunpack.c.l.b16 %v325
        %v393 = vunpack.c.l.b16 %v326
        %v394 = vpack.c.b16 %v363, %v362
        %v395 = vpack.c.b16 %v365, %v364
        %v396 = vpack.c.b16 %v367, %v366
        %v397 = vpack.c.b16 %v369, %v368
        %v398 = vpack.c.b16 %v371, %v370
        %v399 = vpack.c.b16 %v373, %v372
        %v400 = vpack.c.b16 %v375, %v374
        %v401 = vpack.c.b16 %v377, %v376
        %v402 = vpack.c.b16 %v379, %v378
        %v403 = vpack.c.b16 %v381, %v380
        %v404 = vpack.c.b16 %v383, %v382
        %v405 = vpack.c.b16 %v385, %v384
        %v406 = vpack.c.b16 %v387, %v386
        %v407 = vpack.c.b16 %v389, %v388
        %v408 = vpack.c.b16 %v391, %v390
        %v409 = vpack.c.b16 %v393, %v392
        %v442 = vunpack.c.l.b16 %v277
        %v443 = vunpack.c.l.b16 %v278
        %v444 = vunpack.c.l.b16 %v279
        %v445 = vunpack.c.l.b16 %v280
        %v446 = vunpack.c.l.b16 %v281
        %v447 = vunpack.c.l.b16 %v282
        %v448 = vunpack.c.l.b16 %v283
        %v449 = vunpack.c.l.b16 %v284
        %v450 = vunpack.c.l.b16 %v285
        %v451 = vunpack.c.l.b16 %v286
        %v452 = vunpack.c.l.b16 %v287
        %v453 = vunpack.c.l.b16 %v288
        %v454 = vunpack.c.l.b16 %v289
        %v455 = vunpack.c.l.b16 %v290
        %v456 = vunpack.c.l.b16 %v291
        %v457 = vunpack.c.l.b16 %v292
        %v458 = vpack.c.b16 %v443, %v442
        %v459 = vpack.c.b16 %v445, %v444
        %v460 = vpack.c.b16 %v447, %v446
        %v461 = vpack.c.b16 %v449, %v448
        %v462 = vpack.c.b16 %v451, %v450
        %v463 = vpack.c.b16 %v453, %v452
        %v464 = vpack.c.b16 %v455, %v454
        %v465 = vpack.c.b16 %v457, %v456
        %474 = vmatpush.bf16.msra.mxu0 %v465
        %475 = vmatpush.bf16.msra.mxu0 %v464
        %476 = vmatpush.bf16.msra.mxu0 %v463
        %477 = vmatpush.bf16.msra.mxu0 %v462
        %478 = vmatpush.bf16.msra.mxu0 %v461
        %479 = vmatpush.bf16.msra.mxu0 %v460
        %480 = vmatpush.bf16.msra.mxu0 %v459
        %481 = vmatpush.bf16.msra.mxu0 %v458
        %482 = vmatmul.bf16.gmra.mxu0 %v394
        %v483 = vpop.f32.mrf.mxu0
        %v484 = vadd.f32 %v328, %v483
        %v485 = vpop.f32.mrf.mxu0
        %v486 = vadd.f32 %v328, %v485
        %487 = vmatmul.bf16.gmra.mxu0 %v395
        %v488 = vpop.f32.mrf.mxu0
        %v489 = vadd.f32 %v328, %v488
        %v490 = vpop.f32.mrf.mxu0
        %v491 = vadd.f32 %v328, %v490
        %492 = vmatmul.bf16.gmra.mxu0 %v396
        %v493 = vpop.f32.mrf.mxu0
        %v494 = vadd.f32 %v328, %v493
        %v495 = vpop.f32.mrf.mxu0
        %v496 = vadd.f32 %v328, %v495
        %497 = vmatmul.bf16.gmra.mxu0 %v397
        %v498 = vpop.f32.mrf.mxu0
        %v499 = vadd.f32 %v328, %v498
        %v500 = vpop.f32.mrf.mxu0
        %v501 = vadd.f32 %v328, %v500
        %502 = vmatmul.bf16.gmra.mxu0 %v398
        %v503 = vpop.f32.mrf.mxu0
        %v504 = vadd.f32 %v328, %v503
        %v505 = vpop.f32.mrf.mxu0
        %v506 = vadd.f32 %v328, %v505
        %507 = vmatmul.bf16.gmra.mxu0 %v399
        %v508 = vpop.f32.mrf.mxu0
        %v509 = vadd.f32 %v328, %v508
        %v510 = vpop.f32.mrf.mxu0
        %v511 = vadd.f32 %v328, %v510
        %512 = vmatmul.bf16.gmra.mxu0 %v400
        %v513 = vpop.f32.mrf.mxu0
        %v514 = vadd.f32 %v328, %v513
        %v515 = vpop.f32.mrf.mxu0
        %v516 = vadd.f32 %v328, %v515
        %517 = vmatmul.bf16.gmra.mxu0 %v401
        %v518 = vpop.f32.mrf.mxu0
        %v519 = vadd.f32 %v328, %v518
        %v520 = vpop.f32.mrf.mxu0
        %v521 = vadd.f32 %v328, %v520
        %522 = vmatmul.bf16.gmra.mxu0 %v402
        %v523 = vpop.f32.mrf.mxu0
        %v524 = vadd.f32 %v328, %v523
        %v525 = vpop.f32.mrf.mxu0
        %v526 = vadd.f32 %v328, %v525
        %527 = vmatmul.bf16.gmra.mxu0 %v403
        %v528 = vpop.f32.mrf.mxu0
        %v529 = vadd.f32 %v328, %v528
        %v530 = vpop.f32.mrf.mxu0
        %v531 = vadd.f32 %v328, %v530
        %532 = vmatmul.bf16.gmra.mxu0 %v404
        %v533 = vpop.f32.mrf.mxu0
        %v534 = vadd.f32 %v328, %v533
        %v535 = vpop.f32.mrf.mxu0
        %v536 = vadd.f32 %v328, %v535
        %537 = vmatmul.bf16.gmra.mxu0 %v405
        %v538 = vpop.f32.mrf.mxu0
        %v539 = vadd.f32 %v328, %v538
        %v540 = vpop.f32.mrf.mxu0
        %v541 = vadd.f32 %v328, %v540
        %542 = vmatmul.bf16.gmra.mxu0 %v406
        %v543 = vpop.f32.mrf.mxu0
        %v544 = vadd.f32 %v328, %v543
        %v545 = vpop.f32.mrf.mxu0
        %v546 = vadd.f32 %v328, %v545
        %547 = vmatmul.bf16.gmra.mxu0 %v407
        %v548 = vpop.f32.mrf.mxu0
        %v549 = vadd.f32 %v328, %v548
        %v550 = vpop.f32.mrf.mxu0
        %v551 = vadd.f32 %v328, %v550
        %552 = vmatmul.bf16.gmra.mxu0 %v408
        %v553 = vpop.f32.mrf.mxu0
        %v554 = vadd.f32 %v328, %v553
        %v555 = vpop.f32.mrf.mxu0
        %v556 = vadd.f32 %v328, %v555
        %557 = vmatmul.bf16.gmra.mxu0 %v409
        %v558 = vpop.f32.mrf.mxu0
        %v559 = vadd.f32 %v328, %v558
        %v560 = vpop.f32.mrf.mxu0
        %v561 = vadd.f32 %v328, %v560
        %562 = vdwg.mxu0
        %v563 = vld [vmem:[#allocation2] sm:$0xff]
        %v564 = vld [vmem:[#allocation2 + $0x8] sm:$0xff]
        %v565 = vld [vmem:[#allocation2 + $0x10] sm:$0xff]
        %v566 = vld [vmem:[#allocation2 + $0x18] sm:$0xff]
        %v567 = vld [vmem:[#allocation2 + $0x20] sm:$0xff]
        %v568 = vld [vmem:[#allocation2 + $0x28] sm:$0xff]
        %v569 = vld [vmem:[#allocation2 + $0x30] sm:$0xff]
        %v570 = vld [vmem:[#allocation2 + $0x38] sm:$0xff]
        %v571 = vld [vmem:[#allocation2 + $0x40] sm:$0xff]
        %v572 = vld [vmem:[#allocation2 + $0x48] sm:$0xff]
        %v573 = vld [vmem:[#allocation2 + $0x50] sm:$0xff]
        %v574 = vld [vmem:[#allocation2 + $0x58] sm:$0xff]
        %v575 = vld [vmem:[#allocation2 + $0x60] sm:$0xff]
        %v576 = vld [vmem:[#allocation2 + $0x68] sm:$0xff]
        %v577 = vld [vmem:[#allocation2 + $0x70] sm:$0xff]
        %v578 = vld [vmem:[#allocation2 + $0x78] sm:$0xff]
        %v579 = vld [vmem:[#allocation2 + $0x80] sm:$0xff]
        %v580 = vld [vmem:[#allocation2 + $0x88] sm:$0xff]
        %v581 = vld [vmem:[#allocation2 + $0x90] sm:$0xff]
        %v582 = vld [vmem:[#allocation2 + $0x98] sm:$0xff]
        %v583 = vld [vmem:[#allocation2 + $0xa0] sm:$0xff]
        %v584 = vld [vmem:[#allocation2 + $0xa8] sm:$0xff]
        %v585 = vld [vmem:[#allocation2 + $0xb0] sm:$0xff]
        %v586 = vld [vmem:[#allocation2 + $0xb8] sm:$0xff]
        %v587 = vld [vmem:[#allocation2 + $0xc0] sm:$0xff]
        %v588 = vld [vmem:[#allocation2 + $0xc8] sm:$0xff]
        %v589 = vld [vmem:[#allocation2 + $0xd0] sm:$0xff]
        %v590 = vld [vmem:[#allocation2 + $0xd8] sm:$0xff]
        %v591 = vld [vmem:[#allocation2 + $0xe0] sm:$0xff]
        %v592 = vld [vmem:[#allocation2 + $0xe8] sm:$0xff]
        %v593 = vld [vmem:[#allocation2 + $0xf0] sm:$0xff]
        %v594 = vld [vmem:[#allocation2 + $0xf8] sm:$0xff]
        %v595 = vmax.f32 %v563, %v484
        %v596 = vmax.f32 %v564, %v486
        %v597 = vmax.f32 %v565, %v489
        %v598 = vmax.f32 %v566, %v491
        %v599 = vmax.f32 %v567, %v494
        %v600 = vmax.f32 %v568, %v496
        %v601 = vmax.f32 %v569, %v499
        %v602 = vmax.f32 %v570, %v501
        %v603 = vmax.f32 %v571, %v504
        %v604 = vmax.f32 %v572, %v506
        %v605 = vmax.f32 %v573, %v509
        %v606 = vmax.f32 %v574, %v511
        %v607 = vmax.f32 %v575, %v514
        %v608 = vmax.f32 %v576, %v516
        %v609 = vmax.f32 %v577, %v519
        %v610 = vmax.f32 %v578, %v521
        %v611 = vmax.f32 %v579, %v524
        %v612 = vmax.f32 %v580, %v526
        %v613 = vmax.f32 %v581, %v529
        %v614 = vmax.f32 %v582, %v531
        %v615 = vmax.f32 %v583, %v534
        %v616 = vmax.f32 %v584, %v536
        %v617 = vmax.f32 %v585, %v539
        %v618 = vmax.f32 %v586, %v541
        %v619 = vmax.f32 %v587, %v544
        %v620 = vmax.f32 %v588, %v546
        %v621 = vmax.f32 %v589, %v549
        %v622 = vmax.f32 %v590, %v551
        %v623 = vmax.f32 %v591, %v554
        %v624 = vmax.f32 %v592, %v556
        %v625 = vmax.f32 %v593, %v559
        %v626 = vmax.f32 %v594, %v561
        %627 = vst [vmem:[#allocation2] sm:$0xff] %v595
        %628 = vst [vmem:[#allocation2 + $0x8] sm:$0xff] %v596
        %629 = vst [vmem:[#allocation2 + $0x10] sm:$0xff] %v597
        %630 = vst [vmem:[#allocation2 + $0x18] sm:$0xff] %v598
        %631 = vst [vmem:[#allocation2 + $0x20] sm:$0xff] %v599
        %632 = vst [vmem:[#allocation2 + $0x28] sm:$0xff] %v600
        %633 = vst [vmem:[#allocation2 + $0x30] sm:$0xff] %v601
        %634 = vst [vmem:[#allocation2 + $0x38] sm:$0xff] %v602
        %635 = vst [vmem:[#allocation2 + $0x40] sm:$0xff] %v603
        %636 = vst [vmem:[#allocation2 + $0x48] sm:$0xff] %v604
        %637 = vst [vmem:[#allocation2 + $0x50] sm:$0xff] %v605
        %638 = vst [vmem:[#allocation2 + $0x58] sm:$0xff] %v606
        %639 = vst [vmem:[#allocation2 + $0x60] sm:$0xff] %v607
        %640 = vst [vmem:[#allocation2 + $0x68] sm:$0xff] %v608
        %641 = vst [vmem:[#allocation2 + $0x70] sm:$0xff] %v609
        %642 = vst [vmem:[#allocation2 + $0x78] sm:$0xff] %v610
        %643 = vst [vmem:[#allocation2 + $0x80] sm:$0xff] %v611
        %644 = vst [vmem:[#allocation2 + $0x88] sm:$0xff] %v612
        %645 = vst [vmem:[#allocation2 + $0x90] sm:$0xff] %v613
        %646 = vst [vmem:[#allocation2 + $0x98] sm:$0xff] %v614
        %647 = vst [vmem:[#allocation2 + $0xa0] sm:$0xff] %v615
        %648 = vst [vmem:[#allocation2 + $0xa8] sm:$0xff] %v616
        %649 = vst [vmem:[#allocation2 + $0xb0] sm:$0xff] %v617
        %650 = vst [vmem:[#allocation2 + $0xb8] sm:$0xff] %v618
        %651 = vst [vmem:[#allocation2 + $0xc0] sm:$0xff] %v619
        %652 = vst [vmem:[#allocation2 + $0xc8] sm:$0xff] %v620
        %653 = vst [vmem:[#allocation2 + $0xd0] sm:$0xff] %v621
        %654 = vst [vmem:[#allocation2 + $0xd8] sm:$0xff] %v622
        %655 = vst [vmem:[#allocation2 + $0xe0] sm:$0xff] %v623
        %656 = vst [vmem:[#allocation2 + $0xe8] sm:$0xff] %v624
        %657 = vst [vmem:[#allocation2 + $0xf0] sm:$0xff] %v625
        %658 = vst [vmem:[#allocation2 + $0xf8] sm:$0xff] %v626
        %p659 = scmp.eq.s32.totalorder %s26, 3
        // Predicated region
        $region49: #{tpu_custom_call.1} parent=31 // pred_check
          %p660 = pneg %p659
        $region50: #{tpu_custom_call.1} parent=31 // pred_check_branch
          %662 = sbr.rel (%p660) target = $region52
        $region51: #{tpu_custom_call.1} parent=31 // pred_region
          %v663 = vlaneseq
          %v664 = vshrl.u32 %v663, 7
          %v665 = vadd.s32 %v664, 8
          %vm666 = vcmp.lt.s32.totalorder %v664, 9
          %vm667 = vcmp.lt.s32.totalorder %v665, 9
          %v668 = vld [vmem:[#allocation2] sm:$0xff]
          %v669 = vld [vmem:[#allocation2 + $0x8] sm:$0xff]
          %670 = vmax.xlane.f32.xlu0 %v668
          %v671 = vpop.xlane.xlu0 %670
          %672 = vmax.xlane.f32.xlu0 %v669
          %v673 = vpop.xlane.xlu0 %672
          %v674 = vsub.f32 %v668, %v671
          %v675 = vsub.f32 %v669, %v673
          %v676 = vmul.f32 %v674, 1.442695
          %v677 = vpow.pop %v676
          %v678 = vmul.f32 %v675, 1.442695
          %v679 = vpow.pop %v678
          %680 = vadd.xlane.f32.xlu0 %v677
          %v681 = vpop.xlane.xlu0 %680
          %682 = vadd.xlane.f32.xlu0 %v679
          %v683 = vpop.xlane.xlu0 %682
          %v684 = vrcp.pop %v681
          %v685 = vrcp.pop %v683
          %v686 = vmul.f32 %v677, %v684
          %v687 = vmul.f32 %v679, %v685
          %v688 = vsel %vm666, %v686, -inf
          %v689 = vsel %vm667, %v687, -inf
          %v690 = vmax.f32 %v688, %v689
          %v691 = vrot.slane %v690, 4
          %v692 = vmax.f32 %v690, %v691
          %v693 = vrot.slane %v692, 2
          %v694 = vmax.f32 %v692, %v693
          %v695 = vrot.slane %v694, 1
          %v696 = vmax.f32 %v694, %v695
          %697 = vst [vmem:[%s233] sm:$0x1] %v696
          %v698 = vld [vmem:[#allocation2 + $0x10] sm:$0xff]
          %v699 = vld [vmem:[#allocation2 + $0x18] sm:$0xff]
          %700 = vmax.xlane.f32.xlu0 %v698
          %v701 = vpop.xlane.xlu0 %700
          %702 = vmax.xlane.f32.xlu0 %v699
          %v703 = vpop.xlane.xlu0 %702
          %v704 = vsub.f32 %v698, %v701
          %v705 = vsub.f32 %v699, %v703
          %v706 = vmul.f32 %v704, 1.442695
          %v707 = vpow.pop %v706
          %v708 = vmul.f32 %v705, 1.442695
          %v709 = vpow.pop %v708
          %710 = vadd.xlane.f32.xlu0 %v707
          %v711 = vpop.xlane.xlu0 %710
          %712 = vadd.xlane.f32.xlu0 %v709
          %v713 = vpop.xlane.xlu0 %712
          %v714 = vrcp.pop %v711
          %v715 = vrcp.pop %v713
          %v716 = vmul.f32 %v707, %v714
          %v717 = vmul.f32 %v709, %v715
          %v718 = vsel %vm666, %v716, -inf
          %v719 = vsel %vm667, %v717, -inf
          %v720 = vmax.f32 %v718, %v719
          %v721 = vrot.slane %v720, 4
          %v722 = vmax.f32 %v720, %v721
          %v723 = vrot.slane %v722, 2
          %v724 = vmax.f32 %v722, %v723
          %v725 = vrot.slane %v724, 1
          %v726 = vmax.f32 %v724, %v725
          %727 = vst [vmem:[%s233 + $0x1] sm:$0x1] %v726
          %v728 = vld [vmem:[#allocation2 + $0x20] sm:$0xff]
          %v729 = vld [vmem:[#allocation2 + $0x28] sm:$0xff]
          %730 = vmax.xlane.f32.xlu0 %v728
          %v731 = vpop.xlane.xlu0 %730
          %732 = vmax.xlane.f32.xlu0 %v729
          %v733 = vpop.xlane.xlu0 %732
          %v734 = vsub.f32 %v728, %v731
          %v735 = vsub.f32 %v729, %v733
          %v736 = vmul.f32 %v734, 1.442695
          %v737 = vpow.pop %v736
          %v738 = vmul.f32 %v735, 1.442695
          %v739 = vpow.pop %v738
          %740 = vadd.xlane.f32.xlu0 %v737
          %v741 = vpop.xlane.xlu0 %740
          %742 = vadd.xlane.f32.xlu0 %v739
          %v743 = vpop.xlane.xlu0 %742
          %v744 = vrcp.pop %v741
          %v745 = vrcp.pop %v743
          %v746 = vmul.f32 %v737, %v744
          %v747 = vmul.f32 %v739, %v745
          %v748 = vsel %vm666, %v746, -inf
          %v749 = vsel %vm667, %v747, -inf
          %v750 = vmax.f32 %v748, %v749
          %v751 = vrot.slane %v750, 4
          %v752 = vmax.f32 %v750, %v751
          %v753 = vrot.slane %v752, 2
          %v754 = vmax.f32 %v752, %v753
          %v755 = vrot.slane %v754, 1
          %v756 = vmax.f32 %v754, %v755
          %757 = vst [vmem:[%s233 + $0x2] sm:$0x1] %v756
          %v758 = vld [vmem:[#allocation2 + $0x30] sm:$0xff]
          %v759 = vld [vmem:[#allocation2 + $0x38] sm:$0xff]
          %760 = vmax.xlane.f32.xlu0 %v758
          %v761 = vpop.xlane.xlu0 %760
          %762 = vmax.xlane.f32.xlu0 %v759
          %v763 = vpop.xlane.xlu0 %762
          %v764 = vsub.f32 %v758, %v761
          %v765 = vsub.f32 %v759, %v763
          %v766 = vmul.f32 %v764, 1.442695
          %v767 = vpow.pop %v766
          %v768 = vmul.f32 %v765, 1.442695
          %v769 = vpow.pop %v768
          %770 = vadd.xlane.f32.xlu0 %v767
          %v771 = vpop.xlane.xlu0 %770
          %772 = vadd.xlane.f32.xlu0 %v769
          %v773 = vpop.xlane.xlu0 %772
          %v774 = vrcp.pop %v771
          %v775 = vrcp.pop %v773
          %v776 = vmul.f32 %v767, %v774
          %v777 = vmul.f32 %v769, %v775
          %v778 = vsel %vm666, %v776, -inf
          %v779 = vsel %vm667, %v777, -inf
          %v780 = vmax.f32 %v778, %v779
          %v781 = vrot.slane %v780, 4
          %v782 = vmax.f32 %v780, %v781
          %v783 = vrot.slane %v782, 2
          %v784 = vmax.f32 %v782, %v783
          %v785 = vrot.slane %v784, 1
          %v786 = vmax.f32 %v784, %v785
          %787 = vst [vmem:[%s233 + $0x3] sm:$0x1] %v786
          %v788 = vld [vmem:[#allocation2 + $0x40] sm:$0xff]
          %v789 = vld [vmem:[#allocation2 + $0x48] sm:$0xff]
          %790 = vmax.xlane.f32.xlu0 %v788
          %v791 = vpop.xlane.xlu0 %790
          %792 = vmax.xlane.f32.xlu0 %v789
          %v793 = vpop.xlane.xlu0 %792
          %v794 = vsub.f32 %v788, %v791
          %v795 = vsub.f32 %v789, %v793
          %v796 = vmul.f32 %v794, 1.442695
          %v797 = vpow.pop %v796
          %v798 = vmul.f32 %v795, 1.442695
          %v799 = vpow.pop %v798
          %800 = vadd.xlane.f32.xlu0 %v797
          %v801 = vpop.xlane.xlu0 %800
          %802 = vadd.xlane.f32.xlu0 %v799
          %v803 = vpop.xlane.xlu0 %802
          %v804 = vrcp.pop %v801
          %v805 = vrcp.pop %v803
          %v806 = vmul.f32 %v797, %v804
          %v807 = vmul.f32 %v799, %v805
          %v808 = vsel %vm666, %v806, -inf
          %v809 = vsel %vm667, %v807, -inf
          %v810 = vmax.f32 %v808, %v809
          %v811 = vrot.slane %v810, 4
          %v812 = vmax.f32 %v810, %v811
          %v813 = vrot.slane %v812, 2
          %v814 = vmax.f32 %v812, %v813
          %v815 = vrot.slane %v814, 1
          %v816 = vmax.f32 %v814, %v815
          %817 = vst [vmem:[%s233 + $0x4] sm:$0x1] %v816
          %v818 = vld [vmem:[#allocation2 + $0x50] sm:$0xff]
          %v819 = vld [vmem:[#allocation2 + $0x58] sm:$0xff]
          %820 = vmax.xlane.f32.xlu0 %v818
          %v821 = vpop.xlane.xlu0 %820
          %822 = vmax.xlane.f32.xlu0 %v819
          %v823 = vpop.xlane.xlu0 %822
          %v824 = vsub.f32 %v818, %v821
          %v825 = vsub.f32 %v819, %v823
          %v826 = vmul.f32 %v824, 1.442695
          %v827 = vpow.pop %v826
          %v828 = vmul.f32 %v825, 1.442695
          %v829 = vpow.pop %v828
          %830 = vadd.xlane.f32.xlu0 %v827
          %v831 = vpop.xlane.xlu0 %830
          %832 = vadd.xlane.f32.xlu0 %v829
          %v833 = vpop.xlane.xlu0 %832
          %v834 = vrcp.pop %v831
          %v835 = vrcp.pop %v833
          %v836 = vmul.f32 %v827, %v834
          %v837 = vmul.f32 %v829, %v835
          %v838 = vsel %vm666, %v836, -inf
          %v839 = vsel %vm667, %v837, -inf
          %v840 = vmax.f32 %v838, %v839
          %v841 = vrot.slane %v840, 4
          %v842 = vmax.f32 %v840, %v841
          %v843 = vrot.slane %v842, 2
          %v844 = vmax.f32 %v842, %v843
          %v845 = vrot.slane %v844, 1
          %v846 = vmax.f32 %v844, %v845
          %847 = vst [vmem:[%s233 + $0x5] sm:$0x1] %v846
          %v848 = vld [vmem:[#allocation2 + $0x60] sm:$0xff]
          %v849 = vld [vmem:[#allocation2 + $0x68] sm:$0xff]
          %850 = vmax.xlane.f32.xlu0 %v848
          %v851 = vpop.xlane.xlu0 %850
          %852 = vmax.xlane.f32.xlu0 %v849
          %v853 = vpop.xlane.xlu0 %852
          %v854 = vsub.f32 %v848, %v851
          %v855 = vsub.f32 %v849, %v853
          %v856 = vmul.f32 %v854, 1.442695
          %v857 = vpow.pop %v856
          %v858 = vmul.f32 %v855, 1.442695
          %v859 = vpow.pop %v858
          %860 = vadd.xlane.f32.xlu0 %v857
          %v861 = vpop.xlane.xlu0 %860
          %862 = vadd.xlane.f32.xlu0 %v859
          %v863 = vpop.xlane.xlu0 %862
          %v864 = vrcp.pop %v861
          %v865 = vrcp.pop %v863
          %v866 = vmul.f32 %v857, %v864
          %v867 = vmul.f32 %v859, %v865
          %v868 = vsel %vm666, %v866, -inf
          %v869 = vsel %vm667, %v867, -inf
          %v870 = vmax.f32 %v868, %v869
          %v871 = vrot.slane %v870, 4
          %v872 = vmax.f32 %v870, %v871
          %v873 = vrot.slane %v872, 2
          %v874 = vmax.f32 %v872, %v873
          %v875 = vrot.slane %v874, 1
          %v876 = vmax.f32 %v874, %v875
          %877 = vst [vmem:[%s233 + $0x6] sm:$0x1] %v876
          %v878 = vld [vmem:[#allocation2 + $0x70] sm:$0xff]
          %v879 = vld [vmem:[#allocation2 + $0x78] sm:$0xff]
          %880 = vmax.xlane.f32.xlu0 %v878
          %v881 = vpop.xlane.xlu0 %880
          %882 = vmax.xlane.f32.xlu0 %v879
          %v883 = vpop.xlane.xlu0 %882
          %v884 = vsub.f32 %v878, %v881
          %v885 = vsub.f32 %v879, %v883
          %v886 = vmul.f32 %v884, 1.442695
          %v887 = vpow.pop %v886
          %v888 = vmul.f32 %v885, 1.442695
          %v889 = vpow.pop %v888
          %890 = vadd.xlane.f32.xlu0 %v887
          %v891 = vpop.xlane.xlu0 %890
          %892 = vadd.xlane.f32.xlu0 %v889
          %v893 = vpop.xlane.xlu0 %892
          %v894 = vrcp.pop %v891
          %v895 = vrcp.pop %v893
          %v896 = vmul.f32 %v887, %v894
          %v897 = vmul.f32 %v889, %v895
          %v898 = vsel %vm666, %v896, -inf
          %v899 = vsel %vm667, %v897, -inf
          %v900 = vmax.f32 %v898, %v899
          %v901 = vrot.slane %v900, 4
          %v902 = vmax.f32 %v900, %v901
          %v903 = vrot.slane %v902, 2
          %v904 = vmax.f32 %v902, %v903
          %v905 = vrot.slane %v904, 1
          %v906 = vmax.f32 %v904, %v905
          %907 = vst [vmem:[%s233 + $0x7] sm:$0x1] %v906
          %v908 = vld [vmem:[#allocation2 + $0x80] sm:$0xff]
          %v909 = vld [vmem:[#allocation2 + $0x88] sm:$0xff]
          %910 = vmax.xlane.f32.xlu0 %v908
          %v911 = vpop.xlane.xlu0 %910
          %912 = vmax.xlane.f32.xlu0 %v909
          %v913 = vpop.xlane.xlu0 %912
          %v914 = vsub.f32 %v908, %v911
          %v915 = vsub.f32 %v909, %v913
          %v916 = vmul.f32 %v914, 1.442695
          %v917 = vpow.pop %v916
          %v918 = vmul.f32 %v915, 1.442695
          %v919 = vpow.pop %v918
          %920 = vadd.xlane.f32.xlu0 %v917
          %v921 = vpop.xlane.xlu0 %920
          %922 = vadd.xlane.f32.xlu0 %v919
          %v923 = vpop.xlane.xlu0 %922
          %v924 = vrcp.pop %v921
          %v925 = vrcp.pop %v923
          %v926 = vmul.f32 %v917, %v924
          %v927 = vmul.f32 %v919, %v925
          %v928 = vsel %vm666, %v926, -inf
          %v929 = vsel %vm667, %v927, -inf
          %v930 = vmax.f32 %v928, %v929
          %v931 = vrot.slane %v930, 4
          %v932 = vmax.f32 %v930, %v931
          %v933 = vrot.slane %v932, 2
          %v934 = vmax.f32 %v932, %v933
          %v935 = vrot.slane %v934, 1
          %v936 = vmax.f32 %v934, %v935
          %937 = vst [vmem:[%s233 + $0x8] sm:$0x1] %v936
          %v938 = vld [vmem:[#allocation2 + $0x90] sm:$0xff]
          %v939 = vld [vmem:[#allocation2 + $0x98] sm:$0xff]
          %940 = vmax.xlane.f32.xlu0 %v938
          %v941 = vpop.xlane.xlu0 %940
          %942 = vmax.xlane.f32.xlu0 %v939
          %v943 = vpop.xlane.xlu0 %942
          %v944 = vsub.f32 %v938, %v941
          %v945 = vsub.f32 %v939, %v943
          %v946 = vmul.f32 %v944, 1.442695
          %v947 = vpow.pop %v946
          %v948 = vmul.f32 %v945, 1.442695
          %v949 = vpow.pop %v948
          %950 = vadd.xlane.f32.xlu0 %v947
          %v951 = vpop.xlane.xlu0 %950
          %952 = vadd.xlane.f32.xlu0 %v949
          %v953 = vpop.xlane.xlu0 %952
          %v954 = vrcp.pop %v951
          %v955 = vrcp.pop %v953
          %v956 = vmul.f32 %v947, %v954
          %v957 = vmul.f32 %v949, %v955
          %v958 = vsel %vm666, %v956, -inf
          %v959 = vsel %vm667, %v957, -inf
          %v960 = vmax.f32 %v958, %v959
          %v961 = vrot.slane %v960, 4
          %v962 = vmax.f32 %v960, %v961
          %v963 = vrot.slane %v962, 2
          %v964 = vmax.f32 %v962, %v963
          %v965 = vrot.slane %v964, 1
          %v966 = vmax.f32 %v964, %v965
          %967 = vst [vmem:[%s233 + $0x9] sm:$0x1] %v966
          %v968 = vld [vmem:[#allocation2 + $0xa0] sm:$0xff]
          %v969 = vld [vmem:[#allocation2 + $0xa8] sm:$0xff]
          %970 = vmax.xlane.f32.xlu0 %v968
          %v971 = vpop.xlane.xlu0 %970
          %972 = vmax.xlane.f32.xlu0 %v969
          %v973 = vpop.xlane.xlu0 %972
          %v974 = vsub.f32 %v968, %v971
          %v975 = vsub.f32 %v969, %v973
          %v976 = vmul.f32 %v974, 1.442695
          %v977 = vpow.pop %v976
          %v978 = vmul.f32 %v975, 1.442695
          %v979 = vpow.pop %v978
          %980 = vadd.xlane.f32.xlu0 %v977
          %v981 = vpop.xlane.xlu0 %980
          %982 = vadd.xlane.f32.xlu0 %v979
          %v983 = vpop.xlane.xlu0 %982
          %v984 = vrcp.pop %v981
          %v985 = vrcp.pop %v983
          %v986 = vmul.f32 %v977, %v984
          %v987 = vmul.f32 %v979, %v985
          %v988 = vsel %vm666, %v986, -inf
          %v989 = vsel %vm667, %v987, -inf
          %v990 = vmax.f32 %v988, %v989
          %v991 = vrot.slane %v990, 4
          %v992 = vmax.f32 %v990, %v991
          %v993 = vrot.slane %v992, 2
          %v994 = vmax.f32 %v992, %v993
          %v995 = vrot.slane %v994, 1
          %v996 = vmax.f32 %v994, %v995
          %997 = vst [vmem:[%s233 + $0xa] sm:$0x1] %v996
          %v998 = vld [vmem:[#allocation2 + $0xb0] sm:$0xff]
          %v999 = vld [vmem:[#allocation2 + $0xb8] sm:$0xff]
          %1000 = vmax.xlane.f32.xlu0 %v998
          %v1001 = vpop.xlane.xlu0 %1000
          %1002 = vmax.xlane.f32.xlu0 %v999
          %v1003 = vpop.xlane.xlu0 %1002
          %v1004 = vsub.f32 %v998, %v1001
          %v1005 = vsub.f32 %v999, %v1003
          %v1006 = vmul.f32 %v1004, 1.442695
          %v1007 = vpow.pop %v1006
          %v1008 = vmul.f32 %v1005, 1.442695
          %v1009 = vpow.pop %v1008
          %1010 = vadd.xlane.f32.xlu0 %v1007
          %v1011 = vpop.xlane.xlu0 %1010
          %1012 = vadd.xlane.f32.xlu0 %v1009
          %v1013 = vpop.xlane.xlu0 %1012
          %v1014 = vrcp.pop %v1011
          %v1015 = vrcp.pop %v1013
          %v1016 = vmul.f32 %v1007, %v1014
          %v1017 = vmul.f32 %v1009, %v1015
          %v1018 = vsel %vm666, %v1016, -inf
          %v1019 = vsel %vm667, %v1017, -inf
          %v1020 = vmax.f32 %v1018, %v1019
          %v1021 = vrot.slane %v1020, 4
          %v1022 = vmax.f32 %v1020, %v1021
          %v1023 = vrot.slane %v1022, 2
          %v1024 = vmax.f32 %v1022, %v1023
          %v1025 = vrot.slane %v1024, 1
          %v1026 = vmax.f32 %v1024, %v1025
          %1027 = vst [vmem:[%s233 + $0xb] sm:$0x1] %v1026
          %v1028 = vld [vmem:[#allocation2 + $0xc0] sm:$0xff]
          %v1029 = vld [vmem:[#allocation2 + $0xc8] sm:$0xff]
          %1030 = vmax.xlane.f32.xlu0 %v1028
          %v1031 = vpop.xlane.xlu0 %1030
          %1032 = vmax.xlane.f32.xlu0 %v1029
          %v1033 = vpop.xlane.xlu0 %1032
          %v1034 = vsub.f32 %v1028, %v1031
          %v1035 = vsub.f32 %v1029, %v1033
          %v1036 = vmul.f32 %v1034, 1.442695
          %v1037 = vpow.pop %v1036
          %v1038 = vmul.f32 %v1035, 1.442695
          %v1039 = vpow.pop %v1038
          %1040 = vadd.xlane.f32.xlu0 %v1037
          %v1041 = vpop.xlane.xlu0 %1040
          %1042 = vadd.xlane.f32.xlu0 %v1039
          %v1043 = vpop.xlane.xlu0 %1042
          %v1044 = vrcp.pop %v1041
          %v1045 = vrcp.pop %v1043
          %v1046 = vmul.f32 %v1037, %v1044
          %v1047 = vmul.f32 %v1039, %v1045
          %v1048 = vsel %vm666, %v1046, -inf
          %v1049 = vsel %vm667, %v1047, -inf
          %v1050 = vmax.f32 %v1048, %v1049
          %v1051 = vrot.slane %v1050, 4
          %v1052 = vmax.f32 %v1050, %v1051
          %v1053 = vrot.slane %v1052, 2
          %v1054 = vmax.f32 %v1052, %v1053
          %v1055 = vrot.slane %v1054, 1
          %v1056 = vmax.f32 %v1054, %v1055
          %1057 = vst [vmem:[%s233 + $0xc] sm:$0x1] %v1056
          %v1058 = vld [vmem:[#allocation2 + $0xd0] sm:$0xff]
          %v1059 = vld [vmem:[#allocation2 + $0xd8] sm:$0xff]
          %1060 = vmax.xlane.f32.xlu0 %v1058
          %v1061 = vpop.xlane.xlu0 %1060
          %1062 = vmax.xlane.f32.xlu0 %v1059
          %v1063 = vpop.xlane.xlu0 %1062
          %v1064 = vsub.f32 %v1058, %v1061
          %v1065 = vsub.f32 %v1059, %v1063
          %v1066 = vmul.f32 %v1064, 1.442695
          %v1067 = vpow.pop %v1066
          %v1068 = vmul.f32 %v1065, 1.442695
          %v1069 = vpow.pop %v1068
          %1070 = vadd.xlane.f32.xlu0 %v1067
          %v1071 = vpop.xlane.xlu0 %1070
          %1072 = vadd.xlane.f32.xlu0 %v1069
          %v1073 = vpop.xlane.xlu0 %1072
          %v1074 = vrcp.pop %v1071
          %v1075 = vrcp.pop %v1073
          %v1076 = vmul.f32 %v1067, %v1074
          %v1077 = vmul.f32 %v1069, %v1075
          %v1078 = vsel %vm666, %v1076, -inf
          %v1079 = vsel %vm667, %v1077, -inf
          %v1080 = vmax.f32 %v1078, %v1079
          %v1081 = vrot.slane %v1080, 4
          %v1082 = vmax.f32 %v1080, %v1081
          %v1083 = vrot.slane %v1082, 2
          %v1084 = vmax.f32 %v1082, %v1083
          %v1085 = vrot.slane %v1084, 1
          %v1086 = vmax.f32 %v1084, %v1085
          %1087 = vst [vmem:[%s233 + $0xd] sm:$0x1] %v1086
          %v1088 = vld [vmem:[#allocation2 + $0xe0] sm:$0xff]
          %v1089 = vld [vmem:[#allocation2 + $0xe8] sm:$0xff]
          %1090 = vmax.xlane.f32.xlu0 %v1088
          %v1091 = vpop.xlane.xlu0 %1090
          %1092 = vmax.xlane.f32.xlu0 %v1089
          %v1093 = vpop.xlane.xlu0 %1092
          %v1094 = vsub.f32 %v1088, %v1091
          %v1095 = vsub.f32 %v1089, %v1093
          %v1096 = vmul.f32 %v1094, 1.442695
          %v1097 = vpow.pop %v1096
          %v1098 = vmul.f32 %v1095, 1.442695
          %v1099 = vpow.pop %v1098
          %1100 = vadd.xlane.f32.xlu0 %v1097
          %v1101 = vpop.xlane.xlu0 %1100
          %1102 = vadd.xlane.f32.xlu0 %v1099
          %v1103 = vpop.xlane.xlu0 %1102
          %v1104 = vrcp.pop %v1101
          %v1105 = vrcp.pop %v1103
          %v1106 = vmul.f32 %v1097, %v1104
          %v1107 = vmul.f32 %v1099, %v1105
          %v1108 = vsel %vm666, %v1106, -inf
          %v1109 = vsel %vm667, %v1107, -inf
          %v1110 = vmax.f32 %v1108, %v1109
          %v1111 = vrot.slane %v1110, 4
          %v1112 = vmax.f32 %v1110, %v1111
          %v1113 = vrot.slane %v1112, 2
          %v1114 = vmax.f32 %v1112, %v1113
          %v1115 = vrot.slane %v1114, 1
          %v1116 = vmax.f32 %v1114, %v1115
          %1117 = vst [vmem:[%s233 + $0xe] sm:$0x1] %v1116
          %v1118 = vld [vmem:[#allocation2 + $0xf0] sm:$0xff]
          %v1119 = vld [vmem:[#allocation2 + $0xf8] sm:$0xff]
          %1120 = vmax.xlane.f32.xlu0 %v1118
          %v1121 = vpop.xlane.xlu0 %1120
          %1122 = vmax.xlane.f32.xlu0 %v1119
          %v1123 = vpop.xlane.xlu0 %1122
          %v1124 = vsub.f32 %v1118, %v1121
          %v1125 = vsub.f32 %v1119, %v1123
          %v1126 = vmul.f32 %v1124, 1.442695
          %v1127 = vpow.pop %v1126
          %v1128 = vmul.f32 %v1125, 1.442695
          %v1129 = vpow.pop %v1128
          %1130 = vadd.xlane.f32.xlu0 %v1127
          %v1131 = vpop.xlane.xlu0 %1130
          %1132 = vadd.xlane.f32.xlu0 %v1129
          %v1133 = vpop.xlane.xlu0 %1132
          %v1134 = vrcp.pop %v1131
          %v1135 = vrcp.pop %v1133
          %v1136 = vmul.f32 %v1127, %v1134
          %v1137 = vmul.f32 %v1129, %v1135
          %v1138 = vsel %vm666, %v1136, -inf
          %v1139 = vsel %vm667, %v1137, -inf
          %v1140 = vmax.f32 %v1138, %v1139
          %v1141 = vrot.slane %v1140, 4
          %v1142 = vmax.f32 %v1140, %v1141
          %v1143 = vrot.slane %v1142, 2
          %v1144 = vmax.f32 %v1142, %v1143
          %v1145 = vrot.slane %v1144, 1
          %v1146 = vmax.f32 %v1144, %v1145
          %1147 = vst [vmem:[%s233 + $0xf] sm:$0x1] %v1146
        $region52: #{tpu_custom_call.1} parent=31 // pred_fallthru
          _
        %s1148 = sand.u32 %s109, 1
        %s1149 = scalar_lea.sflag [#allocation5], %s1148
        %s1150 = sand.u32 %s109, 1
        %s1151 = smul.addr %s1150, 16
        %s1152 = scalar_lea.vmem [#allocation9], %s1151
        // Predicated region
        $region53: #{tpu_custom_call.1} parent=31 // pred_check
          %p1153 = pneg %p119
        $region54: #{tpu_custom_call.1} parent=31 // pred_check_branch
          %1155 = sbr.rel (%p1153) target = $region56
        $region55: #{tpu_custom_call.1} parent=31 // pred_region
          %s1156 = smul.u32 2, %s25
          %1158 = vsyncadd %s1149, 0
          %s1159 = smul.addr %s1156, 8
          %s1160 = scalar_lea.hbm %s3, %s1159
          %s1161 = sshll.u32 %s1152, 4
          %s1162 = int_to_ptr.vmem [resolvable:$true] %s1161
          %s1163 = sshll.u32 %s1160, 4
          %s1164 = int_to_ptr.hbm [resolvable:$true] %s1163
          %1169 = dma.vmem_to_hbm [thread:$0]  %s1162, 256, %s1164, %s1149, 128, 128, 8
        $region56: #{tpu_custom_call.1} parent=31 // pred_fallthru
          _
      $region32: #{tpu_custom_call.1} parent=5 // pred_fallthru
        _
      %p1170 = scmp.le.s32.totalorder 2, %s16
      // Predicated region
      $region57: #{tpu_custom_call.1} parent=5 // pred_check
        %p1171 = pneg %p1170
      $region58: #{tpu_custom_call.1} parent=5 // pred_check_branch
        %1173 = sbr.rel (%p1171) target = $region60
      $region59: #{tpu_custom_call.1} parent=5 // pred_region
        %s1174 = ssub.s32 %s16, 2
        // Predicated region
        $region61: #{tpu_custom_call.1} parent=59 // pred_check
          %p1175 = pneg %p125
        $region62: #{tpu_custom_call.1} parent=59 // pred_check_branch
          %1177 = sbr.rel (%p1175) target = $region64
        $region63: #{tpu_custom_call.1} parent=59 // pred_region
          %s1178 = sand.u32 %s110, 1
          %s1179 = scalar_lea.sflag [#allocation5], %s1178
          %s1180 = sand.u32 %s110, 1
          %s1181 = smul.addr %s1180, 16
          %s1182 = scalar_lea.vmem [#allocation9], %s1181
          %1184 = dma.done %s1179, 256
        $region64: #{tpu_custom_call.1} parent=59 // pred_fallthru
          _
      $region60: #{tpu_custom_call.1} parent=5 // pred_fallthru
        _
    $region6: #{tpu_custom_call.1} parent=1 // loop_footer
      %s20 = sadd.s32 1, %s16
    $region7: #{tpu_custom_call.1} parent=1 // loop_footer_branch
      %15 = sbr.rel target = $region3
    $region8: #{tpu_custom_call.1} parent=1 // loop_exit
      _
    %1185 = vsyncpa [#allocation4], 1
    %s1186 = scalar_lea.sflag [#allocation4], 1
    %1187 = vsyncpa %s1186, 1
    %1188 = vsyncpa [#allocation7], 1
    %1189 = vsyncpa [#allocation5], 1
    %s1190 = scalar_lea.sflag [#allocation5], 1
    %1191 = vsyncpa %s1190, 1

</llo_original>
